<compile_context>
chip_gen: v7x
topology: tpu7x:2x2x1
jax: 0.10.0
libtpu: 0.0.40
codegen_flags: <defaults>
</compile_context>

<pallas_src>
import math

import jax
import jax.numpy as jnp
from jax.experimental import pallas as pl
from jax.experimental.pallas import tpu as pltpu

EMBED_DIM = 32      # params.embedding_dim (small test size)
LSTM_DIM = 1024     # fixed by the module
ATTN_DIM = 128      # fixed by the module
LOC_CH = 32         # location conv channels
KSIZE = 31          # location conv kernel size
TCHUNK = 256        # in-kernel time chunk for the conv/tanh/energy stage
NEG_MASK = -1e30    # finite mask value: avoids NaN if a row were fully masked


def attention_kernel(enc_ref, penc_ref, lstm_ref, cum_ref, lens_ref,
                     w_lstm_ref, w_loc_ref, b_loc_ref, w_e_ref,
                     ctx_ref, attn_ref):
    Bb, T, _ = enc_ref.shape

    # processed_lstm_output (+ folded location bias): [Bb,1024] @ [1024,128]
    lstm = lstm_ref[...].reshape(Bb, LSTM_DIM)
    p = jnp.dot(lstm, w_lstm_ref[...], preferred_element_type=jnp.float32)
    p = p + b_loc_ref[...]                                        # [Bb, 128]

    w_loc = w_loc_ref[...]                                        # [31, 128] fused conv@dense
    w_e = w_e_ref[...]                                            # [1, 128]

    # location conv + dense + tanh + energy, chunked over time so no full
    # [Bb, T, 128] intermediate is ever live at production T.
    e_chunks = []
    for t0 in range(0, T, TCHUNK):
        tc = min(TCHUNK, T - t0)
        pre = p[:, None, :] + penc_ref[:, t0:t0 + tc, :]          # [Bb, tc, 128]
        # 31 conv taps: shifted sublane slices of the padded cum weights,
        # accumulated with the fused [tap, 128] weight (VPU broadcast-MAC).
        # TODO(synk): at very large T an MXU formulation of this tap sum could
        # relieve the VPU further; at current shapes the kernel is HBM-bound.
        for k in range(KSIZE):
            tap = cum_ref[:, t0 + k:t0 + k + tc, :]               # [Bb, tc, 1]
            pre = pre + tap * w_loc[k][None, None, :]
        h = jnp.tanh(pre)
        e_chunks.append(jnp.sum(h * w_e[None, :, :], axis=-1))    # [Bb, tc]
    energies = e_chunks[0] if len(e_chunks) == 1 else jnp.concatenate(e_chunks, axis=-1)

    # mask positions t >= text_lengths[i]
    t_idx = jax.lax.broadcasted_iota(jnp.int32, (Bb, T), 1)
    lens = lens_ref[...].reshape(Bb, 1)
    energies = jnp.where(t_idx < lens, energies, NEG_MASK)

    # softmax over the time (lane) axis
    m = jnp.max(energies, axis=-1, keepdims=True)
    ex = jnp.exp(energies - m)
    denom = jnp.sum(ex, axis=-1, keepdims=True)
    attn = ex * pl.reciprocal(denom)                              # exact reciprocal
    attn_ref[...] = attn[:, None, :]

    # attention_context: VPU broadcast-multiply + reduce over time (no M=1 matmul)
    ctx = jnp.sum(attn[:, :, None] * enc_ref[...], axis=1)        # [Bb, E]
    ctx_ref[...] = ctx[:, None, :]


def _pick_batch_block(B):
    # <= 4 (v7x 64 MiB VMEM headroom) and at least 2 grid steps whenever B >= 2
    # so megacore sharding and software pipelining both engage.
    for cand in (4, 2, 1):
        if B % cand == 0 and B // cand >= 2:
            return cand
    return 1


def attention_forward(params, encoder_output, text_lengths,
                      processed_encoder_output, lstm_output,
                      attention_weights_cum):
    B, T, E = encoder_output.shape
    Tpad = T + KSIZE - 1

    # ---- one-time wrapper-side weight fusion / re-layout (tiny XLA glue) ----
    w_lstm_t = params['w_lstm'].T                                       # [1024, 128]
    w_loc_t = (params['w_dense'] @ params['w_conv']).T                  # [31, 128]
    b_loc = params['b_conv'] @ params['w_dense'].T + params['b_dense']  # [1, 128]
    # (b_e dropped: a constant energy offset cancels exactly in the softmax)

    # ---- tiny input re-layouts only: NO padded copies of enc / penc ----
    cum3 = jnp.pad(attention_weights_cum,
                   ((0, 0), (KSIZE // 2, KSIZE // 2)))[:, :, None]      # [B, T+30, 1]
    lstm3 = lstm_output[:, None, :]                                     # [B, 1, 1024]
    lens3 = text_lengths.astype(jnp.int32)[:, None, None]               # [B, 1, 1]

    b_blk = _pick_batch_block(B)
    grid = (B // b_blk,)

    ctx, attn = pl.pallas_call(
        attention_kernel,
        grid=grid,
        in_specs=[
            pl.BlockSpec((b_blk, T, E), lambda b: (b, 0, 0)),           # encoder_output
            pl.BlockSpec((b_blk, T, ATTN_DIM), lambda b: (b, 0, 0)),    # processed enc out
            pl.BlockSpec((b_blk, 1, LSTM_DIM), lambda b: (b, 0, 0)),    # lstm_output
            pl.BlockSpec((b_blk, Tpad, 1), lambda b: (b, 0, 0)),        # padded cum weights
            pl.BlockSpec((b_blk, 1, 1), lambda b: (b, 0, 0)),           # text_lengths
            # weights: constant index_map -> DMA'd once, resident across grid steps
            # TODO(synk): pipeline_mode=pl.Buffered(1) would single-buffer these
            # resident blocks and save ~0.6 MiB of VMEM on v7x.
            pl.BlockSpec((LSTM_DIM, ATTN_DIM), lambda b: (0, 0)),       # w_lstm (pre-T)
            pl.BlockSpec((KSIZE, ATTN_DIM), lambda b: (0, 0)),          # fused conv@dense
            pl.BlockSpec((1, ATTN_DIM), lambda b: (0, 0)),              # fused loc bias
            pl.BlockSpec((1, ATTN_DIM), lambda b: (0, 0)),              # w_e
        ],
        out_specs=(
            pl.BlockSpec((b_blk, 1, E), lambda b: (b, 0, 0)),
            pl.BlockSpec((b_blk, 1, T), lambda b: (b, 0, 0)),
        ),
        out_shape=(jax.ShapeDtypeStruct((B, 1, E), jnp.float32),
                   jax.ShapeDtypeStruct((B, 1, T), jnp.float32)),
        compiler_params=pltpu.CompilerParams(
            dimension_semantics=("parallel",),
            vmem_limit_bytes=48 * 1024 * 1024),
    )(encoder_output, processed_encoder_output, lstm3, cum3, lens3,
      w_lstm_t, w_loc_t, b_loc, params['w_e'])

    # attention_context shaped [B, 1, E] like torch.bmm output; attn back to [B, T]
    return ctx, attn[:, 0, :]


def xavier_uniform(key, shape, fan_in, fan_out, gain):
    limit = gain * math.sqrt(6.0 / (fan_in + fan_out))
    return jax.random.uniform(key, shape, jnp.float32, -limit, limit)


def init_params(key):
    g_tanh = 5.0 / 3.0
    g_lin = 1.0
    ks = jax.random.split(key, 8)
    w_lstm = xavier_uniform(ks[0], (ATTN_DIM, LSTM_DIM), LSTM_DIM, ATTN_DIM, g_tanh)
    # Conv1d weight [out_ch, in_ch, k] -> [32, 31] (in_ch = 1)
    w_conv = xavier_uniform(ks[1], (LOC_CH, KSIZE), 1 * KSIZE, LOC_CH * KSIZE, g_lin)
    b_conv = jax.random.uniform(ks[2], (1, LOC_CH), jnp.float32,
                                -1.0 / math.sqrt(KSIZE), 1.0 / math.sqrt(KSIZE))
    w_dense = xavier_uniform(ks[3], (ATTN_DIM, LOC_CH), LOC_CH, ATTN_DIM, g_tanh)
    b_dense = jax.random.uniform(ks[4], (1, ATTN_DIM), jnp.float32,
                                 -1.0 / math.sqrt(LOC_CH), 1.0 / math.sqrt(LOC_CH))
    w_e = xavier_uniform(ks[5], (1, ATTN_DIM), ATTN_DIM, 1, g_lin)
    b_e = jax.random.uniform(ks[6], (1, 1), jnp.float32,
                             -1.0 / math.sqrt(ATTN_DIM), 1.0 / math.sqrt(ATTN_DIM))
    return dict(w_lstm=w_lstm, w_conv=w_conv, b_conv=b_conv,
                w_dense=w_dense, b_dense=b_dense, w_e=w_e, b_e=b_e)


def reference_forward(params, enc, lens, penc, lstm, cum):
    """Pure-JAX reference mirroring the PyTorch forward."""
    B, T, E = enc.shape
    p_lstm = lstm @ params['w_lstm'].T
    pad = jnp.pad(cum, ((0, 0), (KSIZE // 2, KSIZE // 2)))
    idx = jnp.arange(T)[:, None] + jnp.arange(KSIZE)[None, :]
    xcol = pad[:, idx]
    conv = jnp.einsum('btk,ck->btc', xcol, params['w_conv']) + params['b_conv']
    loc = jnp.einsum('btc,dc->btd', conv, params['w_dense']) + params['b_dense']
    h = jnp.tanh(p_lstm[:, None, :] + loc + penc)
    e = jnp.sum(h * params['w_e'][0][None, None, :], axis=-1) + params['b_e'][0, 0]
    mask = jnp.arange(T)[None, :] < lens[:, None]
    e = jnp.where(mask, e, -jnp.inf)
    attn = jax.nn.softmax(e, axis=-1)
    ctx = jnp.einsum('bt,bte->be', attn, enc)[:, None, :]
    return ctx, attn


if __name__ == "__main__":
    B, T = 2, 16
    key = jax.random.PRNGKey(0)
    k_p, k1, k2, k3, k4 = jax.random.split(key, 5)

    params = init_params(k_p)
    encoder_output = jax.random.normal(k1, (B, T, EMBED_DIM), jnp.float32)
    processed_encoder_output = jax.random.normal(k2, (B, T, ATTN_DIM), jnp.float32)
    lstm_output = jax.random.normal(k3, (B, LSTM_DIM), jnp.float32)
    attention_weights_cum = jax.random.uniform(k4, (B, T), jnp.float32)
    text_lengths = jnp.array([T, 11], dtype=jnp.int32)

    ctx, attn = attention_forward(params, encoder_output, text_lengths,
                                  processed_encoder_output, lstm_output,
                                  attention_weights_cum)
    jax.block_until_ready((ctx, attn))

    ctx_ref, attn_ref = reference_forward(params, encoder_output, text_lengths,
                                          processed_encoder_output, lstm_output,
                                          attention_weights_cum)
    assert ctx.shape == (B, 1, EMBED_DIM) and attn.shape == (B, T)
    assert jnp.allclose(attn, attn_ref, atol=1e-4, rtol=1e-4)
    assert jnp.allclose(ctx, ctx_ref, atol=1e-4, rtol=1e-4)
    print("KERNEL_OK")
</pallas_src>

<mosaic_0001>
module attributes {stable_mosaic.version = 11 : i64} {
  func.func @attention_kernel(%arg0: i32, %arg1: memref<1x16x32xf32, #tpu.memory_space<vmem>>, %arg2: memref<1x16x128xf32, #tpu.memory_space<vmem>>, %arg3: memref<1x1x1024xf32, #tpu.memory_space<vmem>>, %arg4: memref<1x46x1xf32, #tpu.memory_space<vmem>>, %arg5: memref<1x1x1xi32, #tpu.memory_space<vmem>>, %arg6: memref<1024x128xf32, #tpu.memory_space<vmem>>, %arg7: memref<31x128xf32, #tpu.memory_space<vmem>>, %arg8: memref<1x128xf32, #tpu.memory_space<vmem>>, %arg9: memref<1x128xf32, #tpu.memory_space<vmem>>, %arg10: memref<1x1x32xf32, #tpu.memory_space<vmem>>, %arg11: memref<1x1x16xf32, #tpu.memory_space<vmem>>) attributes {dimension_semantics = [#tpu.dimension_semantics<parallel>], iteration_bounds = array<i64: 2>, scalar_prefetch = 0 : i64, scratch_operands = 0 : i64, tpu.core_type = #tpu.core_type<tc>, window_params = [{transform_indices = @transform_0, window_bounds = array<i64: 1, 16, 32>}, {transform_indices = @transform_1, window_bounds = array<i64: 1, 16, 128>}, {transform_indices = @transform_2, window_bounds = array<i64: 1, 1, 1024>}, {transform_indices = @transform_3, window_bounds = array<i64: 1, 46, 1>}, {transform_indices = @transform_4, window_bounds = array<i64: 1, 1, 1>}, {pipeline_mode = #tpu.pipeline_mode<synchronous>, transform_indices = @transform_5, window_bounds = array<i64: 1024, 128>}, {pipeline_mode = #tpu.pipeline_mode<synchronous>, transform_indices = @transform_6, window_bounds = array<i64: 31, 128>}, {pipeline_mode = #tpu.pipeline_mode<synchronous>, transform_indices = @transform_7, window_bounds = array<i64: 1, 128>}, {pipeline_mode = #tpu.pipeline_mode<synchronous>, transform_indices = @transform_8, window_bounds = array<i64: 1, 128>}, {transform_indices = @transform_9, window_bounds = array<i64: 1, 1, 32>}, {transform_indices = @transform_10, window_bounds = array<i64: 1, 1, 16>}]} {
    %c0 = arith.constant 0 : index
    %c0_0 = arith.constant 0 : index
    %c0_1 = arith.constant 0 : index
    %0 = vector.load %arg3[%c0, %c0_0, %c0_1] : memref<1x1x1024xf32, #tpu.memory_space<vmem>>, vector<1x1x1024xf32>
    %1 = vector.shape_cast %0 : vector<1x1x1024xf32> to vector<1x1024xf32>
    %c0_2 = arith.constant 0 : index
    %c0_3 = arith.constant 0 : index
    %2 = vector.load %arg6[%c0_2, %c0_3] : memref<1024x128xf32, #tpu.memory_space<vmem>>, vector<1024x128xf32>
    %cst = arith.constant dense<0.000000e+00> : vector<1x128xf32>
    %3 = tpu.matmul %1, %2, %cst {dimension_numbers = #tpu.dot_dimension_numbers<[1], [0], [0], [1], [0, 0, 1, 1], [], []>} : vector<1x1024xf32>, vector<1024x128xf32>, vector<1x128xf32> -> vector<1x128xf32>
    %c0_4 = arith.constant 0 : index
    %c0_5 = arith.constant 0 : index
    %4 = vector.load %arg8[%c0_4, %c0_5] : memref<1x128xf32, #tpu.memory_space<vmem>>, vector<1x128xf32>
    %5 = arith.addf %3, %4 : vector<1x128xf32>
    %c0_6 = arith.constant 0 : index
    %c0_7 = arith.constant 0 : index
    %6 = vector.load %arg7[%c0_6, %c0_7] : memref<31x128xf32, #tpu.memory_space<vmem>>, vector<31x128xf32>
    %c0_8 = arith.constant 0 : index
    %c0_9 = arith.constant 0 : index
    %7 = vector.load %arg9[%c0_8, %c0_9] : memref<1x128xf32, #tpu.memory_space<vmem>>, vector<1x128xf32>
    %8 = vector.shape_cast %5 : vector<1x128xf32> to vector<1x1x128xf32>
    %c0_10 = arith.constant 0 : index
    %c0_11 = arith.constant 0 : index
    %c0_12 = arith.constant 0 : index
    %9 = vector.load %arg2[%c0_10, %c0_11, %c0_12] : memref<1x16x128xf32, #tpu.memory_space<vmem>>, vector<1x16x128xf32>
    %10 = vector.broadcast %8 : vector<1x1x128xf32> to vector<1x16x128xf32>
    %11 = arith.addf %10, %9 : vector<1x16x128xf32>
    %c0_13 = arith.constant 0 : index
    %c0_14 = arith.constant 0 : index
    %c0_15 = arith.constant 0 : index
    %12 = vector.load %arg4[%c0_13, %c0_14, %c0_15] : memref<1x46x1xf32, #tpu.memory_space<vmem>>, vector<1x16x1xf32>
    %13 = vector.extract_strided_slice %6 {offsets = [0, 0], sizes = [1, 128], strides = [1, 1]} : vector<31x128xf32> to vector<1x128xf32>
    %14 = vector.shape_cast %13 : vector<1x128xf32> to vector<128xf32>
    %15 = vector.shape_cast %14 : vector<128xf32> to vector<1x1x128xf32>
    %16 = vector.broadcast %12 : vector<1x16x1xf32> to vector<1x16x128xf32>
    %17 = vector.broadcast %15 : vector<1x1x128xf32> to vector<1x16x128xf32>
    %18 = arith.mulf %16, %17 : vector<1x16x128xf32>
    %19 = arith.addf %11, %18 : vector<1x16x128xf32>
    %c0_16 = arith.constant 0 : index
    %c1 = arith.constant 1 : index
    %c0_17 = arith.constant 0 : index
    %20 = vector.load %arg4[%c0_16, %c1, %c0_17] : memref<1x46x1xf32, #tpu.memory_space<vmem>>, vector<1x16x1xf32>
    %21 = vector.extract_strided_slice %6 {offsets = [1, 0], sizes = [1, 128], strides = [1, 1]} : vector<31x128xf32> to vector<1x128xf32>
    %22 = vector.shape_cast %21 : vector<1x128xf32> to vector<128xf32>
    %23 = vector.shape_cast %22 : vector<128xf32> to vector<1x1x128xf32>
    %24 = vector.broadcast %20 : vector<1x16x1xf32> to vector<1x16x128xf32>
    %25 = vector.broadcast %23 : vector<1x1x128xf32> to vector<1x16x128xf32>
    %26 = arith.mulf %24, %25 : vector<1x16x128xf32>
    %27 = arith.addf %19, %26 : vector<1x16x128xf32>
    %c0_18 = arith.constant 0 : index
    %c2 = arith.constant 2 : index
    %c0_19 = arith.constant 0 : index
    %28 = vector.load %arg4[%c0_18, %c2, %c0_19] : memref<1x46x1xf32, #tpu.memory_space<vmem>>, vector<1x16x1xf32>
    %29 = vector.extract_strided_slice %6 {offsets = [2, 0], sizes = [1, 128], strides = [1, 1]} : vector<31x128xf32> to vector<1x128xf32>
    %30 = vector.shape_cast %29 : vector<1x128xf32> to vector<128xf32>
    %31 = vector.shape_cast %30 : vector<128xf32> to vector<1x1x128xf32>
    %32 = vector.broadcast %28 : vector<1x16x1xf32> to vector<1x16x128xf32>
    %33 = vector.broadcast %31 : vector<1x1x128xf32> to vector<1x16x128xf32>
    %34 = arith.mulf %32, %33 : vector<1x16x128xf32>
    %35 = arith.addf %27, %34 : vector<1x16x128xf32>
    %c0_20 = arith.constant 0 : index
    %c3 = arith.constant 3 : index
    %c0_21 = arith.constant 0 : index
    %36 = vector.load %arg4[%c0_20, %c3, %c0_21] : memref<1x46x1xf32, #tpu.memory_space<vmem>>, vector<1x16x1xf32>
    %37 = vector.extract_strided_slice %6 {offsets = [3, 0], sizes = [1, 128], strides = [1, 1]} : vector<31x128xf32> to vector<1x128xf32>
    %38 = vector.shape_cast %37 : vector<1x128xf32> to vector<128xf32>
    %39 = vector.shape_cast %38 : vector<128xf32> to vector<1x1x128xf32>
    %40 = vector.broadcast %36 : vector<1x16x1xf32> to vector<1x16x128xf32>
    %41 = vector.broadcast %39 : vector<1x1x128xf32> to vector<1x16x128xf32>
    %42 = arith.mulf %40, %41 : vector<1x16x128xf32>
    %43 = arith.addf %35, %42 : vector<1x16x128xf32>
    %c0_22 = arith.constant 0 : index
    %c4 = arith.constant 4 : index
    %c0_23 = arith.constant 0 : index
    %44 = vector.load %arg4[%c0_22, %c4, %c0_23] : memref<1x46x1xf32, #tpu.memory_space<vmem>>, vector<1x16x1xf32>
    %45 = vector.extract_strided_slice %6 {offsets = [4, 0], sizes = [1, 128], strides = [1, 1]} : vector<31x128xf32> to vector<1x128xf32>
    %46 = vector.shape_cast %45 : vector<1x128xf32> to vector<128xf32>
    %47 = vector.shape_cast %46 : vector<128xf32> to vector<1x1x128xf32>
    %48 = vector.broadcast %44 : vector<1x16x1xf32> to vector<1x16x128xf32>
    %49 = vector.broadcast %47 : vector<1x1x128xf32> to vector<1x16x128xf32>
    %50 = arith.mulf %48, %49 : vector<1x16x128xf32>
    %51 = arith.addf %43, %50 : vector<1x16x128xf32>
    %c0_24 = arith.constant 0 : index
    %c5 = arith.constant 5 : index
    %c0_25 = arith.constant 0 : index
    %52 = vector.load %arg4[%c0_24, %c5, %c0_25] : memref<1x46x1xf32, #tpu.memory_space<vmem>>, vector<1x16x1xf32>
    %53 = vector.extract_strided_slice %6 {offsets = [5, 0], sizes = [1, 128], strides = [1, 1]} : vector<31x128xf32> to vector<1x128xf32>
    %54 = vector.shape_cast %53 : vector<1x128xf32> to vector<128xf32>
    %55 = vector.shape_cast %54 : vector<128xf32> to vector<1x1x128xf32>
    %56 = vector.broadcast %52 : vector<1x16x1xf32> to vector<1x16x128xf32>
    %57 = vector.broadcast %55 : vector<1x1x128xf32> to vector<1x16x128xf32>
    %58 = arith.mulf %56, %57 : vector<1x16x128xf32>
    %59 = arith.addf %51, %58 : vector<1x16x128xf32>
    %c0_26 = arith.constant 0 : index
    %c6 = arith.constant 6 : index
    %c0_27 = arith.constant 0 : index
    %60 = vector.load %arg4[%c0_26, %c6, %c0_27] : memref<1x46x1xf32, #tpu.memory_space<vmem>>, vector<1x16x1xf32>
    %61 = vector.extract_strided_slice %6 {offsets = [6, 0], sizes = [1, 128], strides = [1, 1]} : vector<31x128xf32> to vector<1x128xf32>
    %62 = vector.shape_cast %61 : vector<1x128xf32> to vector<128xf32>
    %63 = vector.shape_cast %62 : vector<128xf32> to vector<1x1x128xf32>
    %64 = vector.broadcast %60 : vector<1x16x1xf32> to vector<1x16x128xf32>
    %65 = vector.broadcast %63 : vector<1x1x128xf32> to vector<1x16x128xf32>
    %66 = arith.mulf %64, %65 : vector<1x16x128xf32>
    %67 = arith.addf %59, %66 : vector<1x16x128xf32>
    %c0_28 = arith.constant 0 : index
    %c7 = arith.constant 7 : index
    %c0_29 = arith.constant 0 : index
    %68 = vector.load %arg4[%c0_28, %c7, %c0_29] : memref<1x46x1xf32, #tpu.memory_space<vmem>>, vector<1x16x1xf32>
    %69 = vector.extract_strided_slice %6 {offsets = [7, 0], sizes = [1, 128], strides = [1, 1]} : vector<31x128xf32> to vector<1x128xf32>
    %70 = vector.shape_cast %69 : vector<1x128xf32> to vector<128xf32>
    %71 = vector.shape_cast %70 : vector<128xf32> to vector<1x1x128xf32>
    %72 = vector.broadcast %68 : vector<1x16x1xf32> to vector<1x16x128xf32>
    %73 = vector.broadcast %71 : vector<1x1x128xf32> to vector<1x16x128xf32>
    %74 = arith.mulf %72, %73 : vector<1x16x128xf32>
    %75 = arith.addf %67, %74 : vector<1x16x128xf32>
    %c0_30 = arith.constant 0 : index
    %c8 = arith.constant 8 : index
    %c0_31 = arith.constant 0 : index
    %76 = vector.load %arg4[%c0_30, %c8, %c0_31] : memref<1x46x1xf32, #tpu.memory_space<vmem>>, vector<1x16x1xf32>
    %77 = vector.extract_strided_slice %6 {offsets = [8, 0], sizes = [1, 128], strides = [1, 1]} : vector<31x128xf32> to vector<1x128xf32>
    %78 = vector.shape_cast %77 : vector<1x128xf32> to vector<128xf32>
    %79 = vector.shape_cast %78 : vector<128xf32> to vector<1x1x128xf32>
    %80 = vector.broadcast %76 : vector<1x16x1xf32> to vector<1x16x128xf32>
    %81 = vector.broadcast %79 : vector<1x1x128xf32> to vector<1x16x128xf32>
    %82 = arith.mulf %80, %81 : vector<1x16x128xf32>
    %83 = arith.addf %75, %82 : vector<1x16x128xf32>
    %c0_32 = arith.constant 0 : index
    %c9 = arith.constant 9 : index
    %c0_33 = arith.constant 0 : index
    %84 = vector.load %arg4[%c0_32, %c9, %c0_33] : memref<1x46x1xf32, #tpu.memory_space<vmem>>, vector<1x16x1xf32>
    %85 = vector.extract_strided_slice %6 {offsets = [9, 0], sizes = [1, 128], strides = [1, 1]} : vector<31x128xf32> to vector<1x128xf32>
    %86 = vector.shape_cast %85 : vector<1x128xf32> to vector<128xf32>
    %87 = vector.shape_cast %86 : vector<128xf32> to vector<1x1x128xf32>
    %88 = vector.broadcast %84 : vector<1x16x1xf32> to vector<1x16x128xf32>
    %89 = vector.broadcast %87 : vector<1x1x128xf32> to vector<1x16x128xf32>
    %90 = arith.mulf %88, %89 : vector<1x16x128xf32>
    %91 = arith.addf %83, %90 : vector<1x16x128xf32>
    %c0_34 = arith.constant 0 : index
    %c10 = arith.constant 10 : index
    %c0_35 = arith.constant 0 : index
    %92 = vector.load %arg4[%c0_34, %c10, %c0_35] : memref<1x46x1xf32, #tpu.memory_space<vmem>>, vector<1x16x1xf32>
    %93 = vector.extract_strided_slice %6 {offsets = [10, 0], sizes = [1, 128], strides = [1, 1]} : vector<31x128xf32> to vector<1x128xf32>
    %94 = vector.shape_cast %93 : vector<1x128xf32> to vector<128xf32>
    %95 = vector.shape_cast %94 : vector<128xf32> to vector<1x1x128xf32>
    %96 = vector.broadcast %92 : vector<1x16x1xf32> to vector<1x16x128xf32>
    %97 = vector.broadcast %95 : vector<1x1x128xf32> to vector<1x16x128xf32>
    %98 = arith.mulf %96, %97 : vector<1x16x128xf32>
    %99 = arith.addf %91, %98 : vector<1x16x128xf32>
    %c0_36 = arith.constant 0 : index
    %c11 = arith.constant 11 : index
    %c0_37 = arith.constant 0 : index
    %100 = vector.load %arg4[%c0_36, %c11, %c0_37] : memref<1x46x1xf32, #tpu.memory_space<vmem>>, vector<1x16x1xf32>
    %101 = vector.extract_strided_slice %6 {offsets = [11, 0], sizes = [1, 128], strides = [1, 1]} : vector<31x128xf32> to vector<1x128xf32>
    %102 = vector.shape_cast %101 : vector<1x128xf32> to vector<128xf32>
    %103 = vector.shape_cast %102 : vector<128xf32> to vector<1x1x128xf32>
    %104 = vector.broadcast %100 : vector<1x16x1xf32> to vector<1x16x128xf32>
    %105 = vector.broadcast %103 : vector<1x1x128xf32> to vector<1x16x128xf32>
    %106 = arith.mulf %104, %105 : vector<1x16x128xf32>
    %107 = arith.addf %99, %106 : vector<1x16x128xf32>
    %c0_38 = arith.constant 0 : index
    %c12 = arith.constant 12 : index
    %c0_39 = arith.constant 0 : index
    %108 = vector.load %arg4[%c0_38, %c12, %c0_39] : memref<1x46x1xf32, #tpu.memory_space<vmem>>, vector<1x16x1xf32>
    %109 = vector.extract_strided_slice %6 {offsets = [12, 0], sizes = [1, 128], strides = [1, 1]} : vector<31x128xf32> to vector<1x128xf32>
    %110 = vector.shape_cast %109 : vector<1x128xf32> to vector<128xf32>
    %111 = vector.shape_cast %110 : vector<128xf32> to vector<1x1x128xf32>
    %112 = vector.broadcast %108 : vector<1x16x1xf32> to vector<1x16x128xf32>
    %113 = vector.broadcast %111 : vector<1x1x128xf32> to vector<1x16x128xf32>
    %114 = arith.mulf %112, %113 : vector<1x16x128xf32>
    %115 = arith.addf %107, %114 : vector<1x16x128xf32>
    %c0_40 = arith.constant 0 : index
    %c13 = arith.constant 13 : index
    %c0_41 = arith.constant 0 : index
    %116 = vector.load %arg4[%c0_40, %c13, %c0_41] : memref<1x46x1xf32, #tpu.memory_space<vmem>>, vector<1x16x1xf32>
    %117 = vector.extract_strided_slice %6 {offsets = [13, 0], sizes = [1, 128], strides = [1, 1]} : vector<31x128xf32> to vector<1x128xf32>
    %118 = vector.shape_cast %117 : vector<1x128xf32> to vector<128xf32>
    %119 = vector.shape_cast %118 : vector<128xf32> to vector<1x1x128xf32>
    %120 = vector.broadcast %116 : vector<1x16x1xf32> to vector<1x16x128xf32>
    %121 = vector.broadcast %119 : vector<1x1x128xf32> to vector<1x16x128xf32>
    %122 = arith.mulf %120, %121 : vector<1x16x128xf32>
    %123 = arith.addf %115, %122 : vector<1x16x128xf32>
    %c0_42 = arith.constant 0 : index
    %c14 = arith.constant 14 : index
    %c0_43 = arith.constant 0 : index
    %124 = vector.load %arg4[%c0_42, %c14, %c0_43] : memref<1x46x1xf32, #tpu.memory_space<vmem>>, vector<1x16x1xf32>
    %125 = vector.extract_strided_slice %6 {offsets = [14, 0], sizes = [1, 128], strides = [1, 1]} : vector<31x128xf32> to vector<1x128xf32>
    %126 = vector.shape_cast %125 : vector<1x128xf32> to vector<128xf32>
    %127 = vector.shape_cast %126 : vector<128xf32> to vector<1x1x128xf32>
    %128 = vector.broadcast %124 : vector<1x16x1xf32> to vector<1x16x128xf32>
    %129 = vector.broadcast %127 : vector<1x1x128xf32> to vector<1x16x128xf32>
    %130 = arith.mulf %128, %129 : vector<1x16x128xf32>
    %131 = arith.addf %123, %130 : vector<1x16x128xf32>
    %c0_44 = arith.constant 0 : index
    %c15 = arith.constant 15 : index
    %c0_45 = arith.constant 0 : index
    %132 = vector.load %arg4[%c0_44, %c15, %c0_45] : memref<1x46x1xf32, #tpu.memory_space<vmem>>, vector<1x16x1xf32>
    %133 = vector.extract_strided_slice %6 {offsets = [15, 0], sizes = [1, 128], strides = [1, 1]} : vector<31x128xf32> to vector<1x128xf32>
    %134 = vector.shape_cast %133 : vector<1x128xf32> to vector<128xf32>
    %135 = vector.shape_cast %134 : vector<128xf32> to vector<1x1x128xf32>
    %136 = vector.broadcast %132 : vector<1x16x1xf32> to vector<1x16x128xf32>
    %137 = vector.broadcast %135 : vector<1x1x128xf32> to vector<1x16x128xf32>
    %138 = arith.mulf %136, %137 : vector<1x16x128xf32>
    %139 = arith.addf %131, %138 : vector<1x16x128xf32>
    %c0_46 = arith.constant 0 : index
    %c16 = arith.constant 16 : index
    %c0_47 = arith.constant 0 : index
    %140 = vector.load %arg4[%c0_46, %c16, %c0_47] : memref<1x46x1xf32, #tpu.memory_space<vmem>>, vector<1x16x1xf32>
    %141 = vector.extract_strided_slice %6 {offsets = [16, 0], sizes = [1, 128], strides = [1, 1]} : vector<31x128xf32> to vector<1x128xf32>
    %142 = vector.shape_cast %141 : vector<1x128xf32> to vector<128xf32>
    %143 = vector.shape_cast %142 : vector<128xf32> to vector<1x1x128xf32>
    %144 = vector.broadcast %140 : vector<1x16x1xf32> to vector<1x16x128xf32>
    %145 = vector.broadcast %143 : vector<1x1x128xf32> to vector<1x16x128xf32>
    %146 = arith.mulf %144, %145 : vector<1x16x128xf32>
    %147 = arith.addf %139, %146 : vector<1x16x128xf32>
    %c0_48 = arith.constant 0 : index
    %c17 = arith.constant 17 : index
    %c0_49 = arith.constant 0 : index
    %148 = vector.load %arg4[%c0_48, %c17, %c0_49] : memref<1x46x1xf32, #tpu.memory_space<vmem>>, vector<1x16x1xf32>
    %149 = vector.extract_strided_slice %6 {offsets = [17, 0], sizes = [1, 128], strides = [1, 1]} : vector<31x128xf32> to vector<1x128xf32>
    %150 = vector.shape_cast %149 : vector<1x128xf32> to vector<128xf32>
    %151 = vector.shape_cast %150 : vector<128xf32> to vector<1x1x128xf32>
    %152 = vector.broadcast %148 : vector<1x16x1xf32> to vector<1x16x128xf32>
    %153 = vector.broadcast %151 : vector<1x1x128xf32> to vector<1x16x128xf32>
    %154 = arith.mulf %152, %153 : vector<1x16x128xf32>
    %155 = arith.addf %147, %154 : vector<1x16x128xf32>
    %c0_50 = arith.constant 0 : index
    %c18 = arith.constant 18 : index
    %c0_51 = arith.constant 0 : index
    %156 = vector.load %arg4[%c0_50, %c18, %c0_51] : memref<1x46x1xf32, #tpu.memory_space<vmem>>, vector<1x16x1xf32>
    %157 = vector.extract_strided_slice %6 {offsets = [18, 0], sizes = [1, 128], strides = [1, 1]} : vector<31x128xf32> to vector<1x128xf32>
    %158 = vector.shape_cast %157 : vector<1x128xf32> to vector<128xf32>
    %159 = vector.shape_cast %158 : vector<128xf32> to vector<1x1x128xf32>
    %160 = vector.broadcast %156 : vector<1x16x1xf32> to vector<1x16x128xf32>
    %161 = vector.broadcast %159 : vector<1x1x128xf32> to vector<1x16x128xf32>
    %162 = arith.mulf %160, %161 : vector<1x16x128xf32>
    %163 = arith.addf %155, %162 : vector<1x16x128xf32>
    %c0_52 = arith.constant 0 : index
    %c19 = arith.constant 19 : index
    %c0_53 = arith.constant 0 : index
    %164 = vector.load %arg4[%c0_52, %c19, %c0_53] : memref<1x46x1xf32, #tpu.memory_space<vmem>>, vector<1x16x1xf32>
    %165 = vector.extract_strided_slice %6 {offsets = [19, 0], sizes = [1, 128], strides = [1, 1]} : vector<31x128xf32> to vector<1x128xf32>
    %166 = vector.shape_cast %165 : vector<1x128xf32> to vector<128xf32>
    %167 = vector.shape_cast %166 : vector<128xf32> to vector<1x1x128xf32>
    %168 = vector.broadcast %164 : vector<1x16x1xf32> to vector<1x16x128xf32>
    %169 = vector.broadcast %167 : vector<1x1x128xf32> to vector<1x16x128xf32>
    %170 = arith.mulf %168, %169 : vector<1x16x128xf32>
    %171 = arith.addf %163, %170 : vector<1x16x128xf32>
    %c0_54 = arith.constant 0 : index
    %c20 = arith.constant 20 : index
    %c0_55 = arith.constant 0 : index
    %172 = vector.load %arg4[%c0_54, %c20, %c0_55] : memref<1x46x1xf32, #tpu.memory_space<vmem>>, vector<1x16x1xf32>
    %173 = vector.extract_strided_slice %6 {offsets = [20, 0], sizes = [1, 128], strides = [1, 1]} : vector<31x128xf32> to vector<1x128xf32>
    %174 = vector.shape_cast %173 : vector<1x128xf32> to vector<128xf32>
    %175 = vector.shape_cast %174 : vector<128xf32> to vector<1x1x128xf32>
    %176 = vector.broadcast %172 : vector<1x16x1xf32> to vector<1x16x128xf32>
    %177 = vector.broadcast %175 : vector<1x1x128xf32> to vector<1x16x128xf32>
    %178 = arith.mulf %176, %177 : vector<1x16x128xf32>
    %179 = arith.addf %171, %178 : vector<1x16x128xf32>
    %c0_56 = arith.constant 0 : index
    %c21 = arith.constant 21 : index
    %c0_57 = arith.constant 0 : index
    %180 = vector.load %arg4[%c0_56, %c21, %c0_57] : memref<1x46x1xf32, #tpu.memory_space<vmem>>, vector<1x16x1xf32>
    %181 = vector.extract_strided_slice %6 {offsets = [21, 0], sizes = [1, 128], strides = [1, 1]} : vector<31x128xf32> to vector<1x128xf32>
    %182 = vector.shape_cast %181 : vector<1x128xf32> to vector<128xf32>
    %183 = vector.shape_cast %182 : vector<128xf32> to vector<1x1x128xf32>
    %184 = vector.broadcast %180 : vector<1x16x1xf32> to vector<1x16x128xf32>
    %185 = vector.broadcast %183 : vector<1x1x128xf32> to vector<1x16x128xf32>
    %186 = arith.mulf %184, %185 : vector<1x16x128xf32>
    %187 = arith.addf %179, %186 : vector<1x16x128xf32>
    %c0_58 = arith.constant 0 : index
    %c22 = arith.constant 22 : index
    %c0_59 = arith.constant 0 : index
    %188 = vector.load %arg4[%c0_58, %c22, %c0_59] : memref<1x46x1xf32, #tpu.memory_space<vmem>>, vector<1x16x1xf32>
    %189 = vector.extract_strided_slice %6 {offsets = [22, 0], sizes = [1, 128], strides = [1, 1]} : vector<31x128xf32> to vector<1x128xf32>
    %190 = vector.shape_cast %189 : vector<1x128xf32> to vector<128xf32>
    %191 = vector.shape_cast %190 : vector<128xf32> to vector<1x1x128xf32>
    %192 = vector.broadcast %188 : vector<1x16x1xf32> to vector<1x16x128xf32>
    %193 = vector.broadcast %191 : vector<1x1x128xf32> to vector<1x16x128xf32>
    %194 = arith.mulf %192, %193 : vector<1x16x128xf32>
    %195 = arith.addf %187, %194 : vector<1x16x128xf32>
    %c0_60 = arith.constant 0 : index
    %c23 = arith.constant 23 : index
    %c0_61 = arith.constant 0 : index
    %196 = vector.load %arg4[%c0_60, %c23, %c0_61] : memref<1x46x1xf32, #tpu.memory_space<vmem>>, vector<1x16x1xf32>
    %197 = vector.extract_strided_slice %6 {offsets = [23, 0], sizes = [1, 128], strides = [1, 1]} : vector<31x128xf32> to vector<1x128xf32>
    %198 = vector.shape_cast %197 : vector<1x128xf32> to vector<128xf32>
    %199 = vector.shape_cast %198 : vector<128xf32> to vector<1x1x128xf32>
    %200 = vector.broadcast %196 : vector<1x16x1xf32> to vector<1x16x128xf32>
    %201 = vector.broadcast %199 : vector<1x1x128xf32> to vector<1x16x128xf32>
    %202 = arith.mulf %200, %201 : vector<1x16x128xf32>
    %203 = arith.addf %195, %202 : vector<1x16x128xf32>
    %c0_62 = arith.constant 0 : index
    %c24 = arith.constant 24 : index
    %c0_63 = arith.constant 0 : index
    %204 = vector.load %arg4[%c0_62, %c24, %c0_63] : memref<1x46x1xf32, #tpu.memory_space<vmem>>, vector<1x16x1xf32>
    %205 = vector.extract_strided_slice %6 {offsets = [24, 0], sizes = [1, 128], strides = [1, 1]} : vector<31x128xf32> to vector<1x128xf32>
    %206 = vector.shape_cast %205 : vector<1x128xf32> to vector<128xf32>
    %207 = vector.shape_cast %206 : vector<128xf32> to vector<1x1x128xf32>
    %208 = vector.broadcast %204 : vector<1x16x1xf32> to vector<1x16x128xf32>
    %209 = vector.broadcast %207 : vector<1x1x128xf32> to vector<1x16x128xf32>
    %210 = arith.mulf %208, %209 : vector<1x16x128xf32>
    %211 = arith.addf %203, %210 : vector<1x16x128xf32>
    %c0_64 = arith.constant 0 : index
    %c25 = arith.constant 25 : index
    %c0_65 = arith.constant 0 : index
    %212 = vector.load %arg4[%c0_64, %c25, %c0_65] : memref<1x46x1xf32, #tpu.memory_space<vmem>>, vector<1x16x1xf32>
    %213 = vector.extract_strided_slice %6 {offsets = [25, 0], sizes = [1, 128], strides = [1, 1]} : vector<31x128xf32> to vector<1x128xf32>
    %214 = vector.shape_cast %213 : vector<1x128xf32> to vector<128xf32>
    %215 = vector.shape_cast %214 : vector<128xf32> to vector<1x1x128xf32>
    %216 = vector.broadcast %212 : vector<1x16x1xf32> to vector<1x16x128xf32>
    %217 = vector.broadcast %215 : vector<1x1x128xf32> to vector<1x16x128xf32>
    %218 = arith.mulf %216, %217 : vector<1x16x128xf32>
    %219 = arith.addf %211, %218 : vector<1x16x128xf32>
    %c0_66 = arith.constant 0 : index
    %c26 = arith.constant 26 : index
    %c0_67 = arith.constant 0 : index
    %220 = vector.load %arg4[%c0_66, %c26, %c0_67] : memref<1x46x1xf32, #tpu.memory_space<vmem>>, vector<1x16x1xf32>
    %221 = vector.extract_strided_slice %6 {offsets = [26, 0], sizes = [1, 128], strides = [1, 1]} : vector<31x128xf32> to vector<1x128xf32>
    %222 = vector.shape_cast %221 : vector<1x128xf32> to vector<128xf32>
    %223 = vector.shape_cast %222 : vector<128xf32> to vector<1x1x128xf32>
    %224 = vector.broadcast %220 : vector<1x16x1xf32> to vector<1x16x128xf32>
    %225 = vector.broadcast %223 : vector<1x1x128xf32> to vector<1x16x128xf32>
    %226 = arith.mulf %224, %225 : vector<1x16x128xf32>
    %227 = arith.addf %219, %226 : vector<1x16x128xf32>
    %c0_68 = arith.constant 0 : index
    %c27 = arith.constant 27 : index
    %c0_69 = arith.constant 0 : index
    %228 = vector.load %arg4[%c0_68, %c27, %c0_69] : memref<1x46x1xf32, #tpu.memory_space<vmem>>, vector<1x16x1xf32>
    %229 = vector.extract_strided_slice %6 {offsets = [27, 0], sizes = [1, 128], strides = [1, 1]} : vector<31x128xf32> to vector<1x128xf32>
    %230 = vector.shape_cast %229 : vector<1x128xf32> to vector<128xf32>
    %231 = vector.shape_cast %230 : vector<128xf32> to vector<1x1x128xf32>
    %232 = vector.broadcast %228 : vector<1x16x1xf32> to vector<1x16x128xf32>
    %233 = vector.broadcast %231 : vector<1x1x128xf32> to vector<1x16x128xf32>
    %234 = arith.mulf %232, %233 : vector<1x16x128xf32>
    %235 = arith.addf %227, %234 : vector<1x16x128xf32>
    %c0_70 = arith.constant 0 : index
    %c28 = arith.constant 28 : index
    %c0_71 = arith.constant 0 : index
    %236 = vector.load %arg4[%c0_70, %c28, %c0_71] : memref<1x46x1xf32, #tpu.memory_space<vmem>>, vector<1x16x1xf32>
    %237 = vector.extract_strided_slice %6 {offsets = [28, 0], sizes = [1, 128], strides = [1, 1]} : vector<31x128xf32> to vector<1x128xf32>
    %238 = vector.shape_cast %237 : vector<1x128xf32> to vector<128xf32>
    %239 = vector.shape_cast %238 : vector<128xf32> to vector<1x1x128xf32>
    %240 = vector.broadcast %236 : vector<1x16x1xf32> to vector<1x16x128xf32>
    %241 = vector.broadcast %239 : vector<1x1x128xf32> to vector<1x16x128xf32>
    %242 = arith.mulf %240, %241 : vector<1x16x128xf32>
    %243 = arith.addf %235, %242 : vector<1x16x128xf32>
    %c0_72 = arith.constant 0 : index
    %c29 = arith.constant 29 : index
    %c0_73 = arith.constant 0 : index
    %244 = vector.load %arg4[%c0_72, %c29, %c0_73] : memref<1x46x1xf32, #tpu.memory_space<vmem>>, vector<1x16x1xf32>
    %245 = vector.extract_strided_slice %6 {offsets = [29, 0], sizes = [1, 128], strides = [1, 1]} : vector<31x128xf32> to vector<1x128xf32>
    %246 = vector.shape_cast %245 : vector<1x128xf32> to vector<128xf32>
    %247 = vector.shape_cast %246 : vector<128xf32> to vector<1x1x128xf32>
    %248 = vector.broadcast %244 : vector<1x16x1xf32> to vector<1x16x128xf32>
    %249 = vector.broadcast %247 : vector<1x1x128xf32> to vector<1x16x128xf32>
    %250 = arith.mulf %248, %249 : vector<1x16x128xf32>
    %251 = arith.addf %243, %250 : vector<1x16x128xf32>
    %c0_74 = arith.constant 0 : index
    %c30 = arith.constant 30 : index
    %c0_75 = arith.constant 0 : index
    %252 = vector.load %arg4[%c0_74, %c30, %c0_75] : memref<1x46x1xf32, #tpu.memory_space<vmem>>, vector<1x16x1xf32>
    %253 = vector.extract_strided_slice %6 {offsets = [30, 0], sizes = [1, 128], strides = [1, 1]} : vector<31x128xf32> to vector<1x128xf32>
    %254 = vector.shape_cast %253 : vector<1x128xf32> to vector<128xf32>
    %255 = vector.shape_cast %254 : vector<128xf32> to vector<1x1x128xf32>
    %256 = vector.broadcast %252 : vector<1x16x1xf32> to vector<1x16x128xf32>
    %257 = vector.broadcast %255 : vector<1x1x128xf32> to vector<1x16x128xf32>
    %258 = arith.mulf %256, %257 : vector<1x16x128xf32>
    %259 = arith.addf %251, %258 : vector<1x16x128xf32>
    %260 = math.tanh %259 : vector<1x16x128xf32>
    %261 = vector.shape_cast %7 : vector<1x128xf32> to vector<1x1x128xf32>
    %262 = vector.broadcast %261 : vector<1x1x128xf32> to vector<1x16x128xf32>
    %263 = arith.mulf %260, %262 : vector<1x16x128xf32>
    %cst_76 = arith.constant dense<0.000000e+00> : vector<1x16xf32>
    %264 = vector.multi_reduction <add>, %263, %cst_76 [2] : vector<1x16x128xf32> to vector<1x16xf32>
    %265 = tpu.iota {dimensions = array<i32: 1>} : vector<1x16xi32>
    %c0_77 = arith.constant 0 : index
    %c0_78 = arith.constant 0 : index
    %c0_79 = arith.constant 0 : index
    %266 = vector.load %arg5[%c0_77, %c0_78, %c0_79] : memref<1x1x1xi32, #tpu.memory_space<vmem>>, vector<1x1x1xi32>
    %267 = vector.shape_cast %266 : vector<1x1x1xi32> to vector<1x1xi32>
    %268 = vector.broadcast %267 : vector<1x1xi32> to vector<1x16xi32>
    %269 = arith.cmpi slt, %265, %268 : vector<1x16xi32>
    %cst_80 = arith.constant -1.000000e+30 : f32
    %270 = vector.broadcast %cst_80 : f32 to vector<1x16xf32>
    %271 = arith.select %269, %264, %270 : vector<1x16xi1>, vector<1x16xf32>
    %cst_81 = arith.constant dense<0xFF800000> : vector<1xf32>
    %272 = vector.multi_reduction <maximumf>, %271, %cst_81 [1] : vector<1x16xf32> to vector<1xf32>
    %273 = vector.shape_cast %272 : vector<1xf32> to vector<1x1xf32>
    %274 = vector.broadcast %273 : vector<1x1xf32> to vector<1x16xf32>
    %275 = arith.subf %271, %274 : vector<1x16xf32>
    %276 = math.exp %275 : vector<1x16xf32>
    %cst_82 = arith.constant dense<0.000000e+00> : vector<1xf32>
    %277 = vector.multi_reduction <add>, %276, %cst_82 [1] : vector<1x16xf32> to vector<1xf32>
    %278 = vector.shape_cast %277 : vector<1xf32> to vector<1x1xf32>
    %279 = tpu.reciprocal %278 : vector<1x1xf32> -> vector<1x1xf32>
    %280 = vector.broadcast %279 : vector<1x1xf32> to vector<1x16xf32>
    %281 = arith.mulf %276, %280 : vector<1x16xf32>
    %282 = vector.shape_cast %281 : vector<1x16xf32> to vector<1x1x16xf32>
    %c0_83 = arith.constant 0 : index
    %c0_84 = arith.constant 0 : index
    %c0_85 = arith.constant 0 : index
    %283 = vector.load %arg11[%c0_83, %c0_84, %c0_85] : memref<1x1x16xf32, #tpu.memory_space<vmem>>, vector<1x1x16xf32>
    tpu.vector_store %arg11[%c0_83, %c0_84, %c0_85], %282 {strides = array<i32>} : memref<1x1x16xf32, #tpu.memory_space<vmem>>, vector<1x1x16xf32>,
    %284 = vector.shape_cast %281 : vector<1x16xf32> to vector<1x16x1xf32>
    %c0_86 = arith.constant 0 : index
    %c0_87 = arith.constant 0 : index
    %c0_88 = arith.constant 0 : index
    %285 = vector.load %arg1[%c0_86, %c0_87, %c0_88] : memref<1x16x32xf32, #tpu.memory_space<vmem>>, vector<1x16x32xf32>
    %286 = vector.broadcast %284 : vector<1x16x1xf32> to vector<1x16x32xf32>
    %287 = arith.mulf %286, %285 : vector<1x16x32xf32>
    %cst_89 = arith.constant dense<0.000000e+00> : vector<1x32xf32>
    %288 = vector.multi_reduction <add>, %287, %cst_89 [1] : vector<1x16x32xf32> to vector<1x32xf32>
    %289 = vector.shape_cast %288 : vector<1x32xf32> to vector<1x1x32xf32>
    %c0_90 = arith.constant 0 : index
    %c0_91 = arith.constant 0 : index
    %c0_92 = arith.constant 0 : index
    %290 = vector.load %arg10[%c0_90, %c0_91, %c0_92] : memref<1x1x32xf32, #tpu.memory_space<vmem>>, vector<1x1x32xf32>
    tpu.vector_store %arg10[%c0_90, %c0_91, %c0_92], %289 {strides = array<i32>} : memref<1x1x32xf32, #tpu.memory_space<vmem>>, vector<1x1x32xf32>,
    return
  }
  func.func @transform_0(%arg0: i32) -> (i32, i32, i32) {
    %c0_i32 = arith.constant 0 : i32
    %c0_i32_0 = arith.constant 0 : i32
    %c0_i32_1 = arith.constant 0 : i32
    return %arg0, %c0_i32, %c0_i32_0 : i32, i32, i32
  }
  func.func @transform_1(%arg0: i32) -> (i32, i32, i32) {
    %c0_i32 = arith.constant 0 : i32
    %c0_i32_0 = arith.constant 0 : i32
    %c0_i32_1 = arith.constant 0 : i32
    return %arg0, %c0_i32, %c0_i32_0 : i32, i32, i32
  }
  func.func @transform_2(%arg0: i32) -> (i32, i32, i32) {
    %c0_i32 = arith.constant 0 : i32
    %c0_i32_0 = arith.constant 0 : i32
    %c0_i32_1 = arith.constant 0 : i32
    return %arg0, %c0_i32, %c0_i32_0 : i32, i32, i32
  }
  func.func @transform_3(%arg0: i32) -> (i32, i32, i32) {
    %c0_i32 = arith.constant 0 : i32
    %c0_i32_0 = arith.constant 0 : i32
    %c0_i32_1 = arith.constant 0 : i32
    return %arg0, %c0_i32, %c0_i32_0 : i32, i32, i32
  }
  func.func @transform_4(%arg0: i32) -> (i32, i32, i32) {
    %c0_i32 = arith.constant 0 : i32
    %c0_i32_0 = arith.constant 0 : i32
    %c0_i32_1 = arith.constant 0 : i32
    return %arg0, %c0_i32, %c0_i32_0 : i32, i32, i32
  }
  func.func @transform_5(%arg0: i32) -> (i32, i32) {
    %c0_i32 = arith.constant 0 : i32
    %c0_i32_0 = arith.constant 0 : i32
    %c0_i32_1 = arith.constant 0 : i32
    return %c0_i32, %c0_i32_0 : i32, i32
  }
  func.func @transform_6(%arg0: i32) -> (i32, i32) {
    %c0_i32 = arith.constant 0 : i32
    %c0_i32_0 = arith.constant 0 : i32
    %c0_i32_1 = arith.constant 0 : i32
    return %c0_i32, %c0_i32_0 : i32, i32
  }
  func.func @transform_7(%arg0: i32) -> (i32, i32) {
    %c0_i32 = arith.constant 0 : i32
    %c0_i32_0 = arith.constant 0 : i32
    %c0_i32_1 = arith.constant 0 : i32
    return %c0_i32, %c0_i32_0 : i32, i32
  }
  func.func @transform_8(%arg0: i32) -> (i32, i32) {
    %c0_i32 = arith.constant 0 : i32
    %c0_i32_0 = arith.constant 0 : i32
    %c0_i32_1 = arith.constant 0 : i32
    return %c0_i32, %c0_i32_0 : i32, i32
  }
  func.func @transform_9(%arg0: i32) -> (i32, i32, i32) {
    %c0_i32 = arith.constant 0 : i32
    %c0_i32_0 = arith.constant 0 : i32
    %c0_i32_1 = arith.constant 0 : i32
    return %arg0, %c0_i32, %c0_i32_0 : i32, i32, i32
  }
  func.func @transform_10(%arg0: i32) -> (i32, i32, i32) {
    %c0_i32 = arith.constant 0 : i32
    %c0_i32_0 = arith.constant 0 : i32
    %c0_i32_1 = arith.constant 0 : i32
    return %arg0, %c0_i32, %c0_i32_0 : i32, i32, i32
  }
}

</mosaic_0001>

<llo_original>
// kernel: tpu_custom_call.1
$region0: #{tpu_custom_call.1}
  #allocation0 [shape = 'u32[]', space=smem, size = 0x4, offset = 0x4, fixed_abs, tag = 'smem constant byte address 0x4 - core index']
  #allocation1 [shape = 'u32[144,128]{1,0:T(1,128)}', space=vmem, size = 0x12000, scoped, tag = 'internal scratch']
  %s0 = inlined_call_operand.vmem [shape: f32[2,16,32], index: 0, kind: input, shape index: {}]
  %s1 = inlined_call_operand.vmem [shape: f32[2,16,128], index: 1, kind: input, shape index: {}]
  %s2 = inlined_call_operand.hbm [shape: f32[2,1,1024], index: 2, kind: input, shape index: {}]
  %s3 = inlined_call_operand.vmem [shape: f32[2,46,1], index: 3, kind: input, shape index: {}]
  %s4 = inlined_call_operand.vmem [shape: s32[2,1,1], index: 4, kind: input, shape index: {}]
  %s5 = inlined_call_operand.hbm [shape: f32[1024,128], index: 5, kind: input, shape index: {}]
  %s6 = inlined_call_operand.vmem [shape: f32[31,128], index: 6, kind: input, shape index: {}]
  %s7 = inlined_call_operand.vmem [shape: f32[1,128], index: 7, kind: input, shape index: {}]
  %s8 = inlined_call_operand.vmem [shape: f32[1,128], index: 8, kind: input, shape index: {}]
  %s9 = inlined_call_operand.hbm [shape: f32[2,1,32], index: 9, kind: output, shape index: {0}]
  %s10 = inlined_call_operand.hbm [shape: f32[2,1,16], index: 10, kind: output, shape index: {1}]
  %11 = xla_tuple %s9, %s10
  %s12 = sld [smem:[#allocation0]]
  $region85: #{tpu_custom_call.1} parent=0
    _
  %s14 = ssub.s32 1, %s12
  %s15 = scalar_select 0, %s14, %s12
  $region1: #{tpu_custom_call.1} parent=0
    #allocation2 [shape = 'u8[8192]{0}', space=vmem, size = 0x2000, scoped, tag = 'input window, operand 2']
    #allocation3 [shape = 's32[2]{0}', space=sflag, size = 0x8, scoped, tag = 'scoped memory for tpu_custom_call.1']
    #allocation4 [shape = 's32[2]{0}', space=sflag, size = 0x8, scoped, tag = 'scoped memory for tpu_custom_call.1']
    #allocation5 [shape = 'u8[524288]{0}', space=vmem, size = 0x80000, scoped, tag = 'input window, operand 5, single buffered']
    #allocation6 [shape = 's32[1]{0}', space=sflag, size = 0x4, scoped, tag = 'scoped memory for tpu_custom_call.1']
    #allocation7 [shape = 'u8[1024]{0}', space=vmem, size = 0x400, scoped, tag = 'output window, operand 0']
    #allocation8 [shape = 'u8[1024]{0}', space=vmem, size = 0x400, scoped, tag = 'output window, operand 1']
    #allocation9 [shape = 's32[2]{0}', space=sflag, size = 0x8, scoped, tag = 'scoped memory for tpu_custom_call.1']
    %16 = vsyncpa [#allocation3], 0
    %s17 = scalar_lea.sflag [#allocation3], 1
    %18 = vsyncpa %s17, 0
    %19 = vsyncpa [#allocation6], 0
    %20 = vsyncpa [#allocation4], 0
    %s21 = scalar_lea.sflag [#allocation4], 1
    %22 = vsyncpa %s21, 0
    %23 = vsyncpa [#allocation9], 0
    %s24 = scalar_lea.sflag [#allocation9], 1
    %25 = vsyncpa %s24, 0
    loop: start=0, step=1, limit=4
    $region2: #{tpu_custom_call.1} parent=1 // loop_pre_header
      _
    $region3: #{tpu_custom_call.1} parent=1 // loop_header
      %s27 = sphi 0, %s31
      %p28 = scmp.ge.s32.totalorder %s27, 4
      %s37 = sphi 0, %s39
      %s40 = sphi 0, %s37
      %s41 = sphi 0, %s40
      %s57 = sphi 0, %s41
      %s63 = sphi 0, %s65
      %s66 = sphi 0, %s63
      %s67 = sphi 0, %s66
      %s83 = sphi 0, %s67
      %s89 = sphi 0, %s91
      %s92 = sphi 0, %s89
      %s93 = sphi 0, %s92
      %s109 = sphi 0, %s93
      %s115 = sphi 0, %s117
      %s118 = sphi 0, %s115
      %s119 = sphi 0, %s118
      %s135 = sphi 0, %s119
      %s141 = sphi 0, %s143
      %s144 = sphi 0, %s141
      %s145 = sphi 0, %s144
      %s161 = sphi 0, %s145
      %s165 = sphi 0, %s165
      %s167 = sphi 0, %s165
      %s168 = sphi 0, %s167
      %s182 = sphi 0, %s168
      %s186 = sphi 0, %s186
      %s188 = sphi 0, %s186
      %s189 = sphi 0, %s188
      %s203 = sphi 0, %s189
      %s207 = sphi 0, %s207
      %s209 = sphi 0, %s207
      %s210 = sphi 0, %s209
      %s224 = sphi 0, %s210
      %s228 = sphi 0, %s228
      %s230 = sphi 0, %s228
      %s231 = sphi 0, %s230
      %s245 = sphi 0, %s231
      %s251 = sphi 0, %s253
      %s254 = sphi 0, %s251
      %s255 = sphi 0, %s254
      %s271 = sphi 0, %s255
      %s277 = sphi 0, %s279
      %s280 = sphi 0, %s277
      %s281 = sphi 0, %s280
      %s297 = sphi 0, %s281
    $region4: #{tpu_custom_call.1} parent=1 // loop_header_branch
      %30 = sbr.rel (%p28) target = $region8
    $region5: #{tpu_custom_call.1} parent=1 // loop_body
      %s32 = ssub.s32 %s27, 1
      %s33 = ssub.s32 %s27, 2
      %s34 = sadd.s32 %s27, 1
      %s35 = ssub.s32 %s27, %s34
      %p36 = scmp.eq.s32.totalorder %s35, 0
      %s38 = sadd.s32 %s37, 1
      %s39 = scalar_select %p36, %s37, %s38
      %p42 = pneg %p36
      %p43 = scmp.eq.s32.totalorder %s27, 1
      %p44 = por %p42, %p43
      %p45 = scmp.ne.s32.totalorder %s37, %s40
      %p46 = scmp.eq.s32.totalorder %s27, 0
      %p47 = por %p45, %p46
      %p48 = scmp.ne.s32.totalorder %s37, %s40
      %p49 = scmp.eq.s32.totalorder %s32, 1
      %p50 = por %p48, %p49
      %p51 = scmp.ne.s32.totalorder %s40, %s41
      %p52 = scmp.eq.s32.totalorder %s32, 0
      %p53 = por %p51, %p52
      %p54 = scmp.ne.s32.totalorder %s40, %s41
      %p55 = scmp.eq.s32.totalorder %s33, 1
      %p56 = por %p54, %p55
      %p58 = scmp.ne.s32.totalorder %s41, %s57
      %p59 = scmp.eq.s32.totalorder %s33, 0
      %p60 = por %p58, %p59
      %s61 = ssub.s32 %s27, %s34
      %p62 = scmp.eq.s32.totalorder %s61, 0
      %s64 = sadd.s32 %s63, 1
      %s65 = scalar_select %p62, %s63, %s64
      %p68 = pneg %p62
      %p69 = scmp.eq.s32.totalorder %s27, 1
      %p70 = por %p68, %p69
      %p71 = scmp.ne.s32.totalorder %s63, %s66
      %p72 = scmp.eq.s32.totalorder %s27, 0
      %p73 = por %p71, %p72
      %p74 = scmp.ne.s32.totalorder %s63, %s66
      %p75 = scmp.eq.s32.totalorder %s32, 1
      %p76 = por %p74, %p75
      %p77 = scmp.ne.s32.totalorder %s66, %s67
      %p78 = scmp.eq.s32.totalorder %s32, 0
      %p79 = por %p77, %p78
      %p80 = scmp.ne.s32.totalorder %s66, %s67
      %p81 = scmp.eq.s32.totalorder %s33, 1
      %p82 = por %p80, %p81
      %p84 = scmp.ne.s32.totalorder %s67, %s83
      %p85 = scmp.eq.s32.totalorder %s33, 0
      %p86 = por %p84, %p85
      %s87 = ssub.s32 %s27, %s34
      %p88 = scmp.eq.s32.totalorder %s87, 0
      %s90 = sadd.s32 %s89, 1
      %s91 = scalar_select %p88, %s89, %s90
      %p94 = pneg %p88
      %p95 = scmp.eq.s32.totalorder %s27, 1
      %p96 = por %p94, %p95
      %p97 = scmp.ne.s32.totalorder %s89, %s92
      %p98 = scmp.eq.s32.totalorder %s27, 0
      %p99 = por %p97, %p98
      %p100 = scmp.ne.s32.totalorder %s89, %s92
      %p101 = scmp.eq.s32.totalorder %s32, 1
      %p102 = por %p100, %p101
      %p103 = scmp.ne.s32.totalorder %s92, %s93
      %p104 = scmp.eq.s32.totalorder %s32, 0
      %p105 = por %p103, %p104
      %p106 = scmp.ne.s32.totalorder %s92, %s93
      %p107 = scmp.eq.s32.totalorder %s33, 1
      %p108 = por %p106, %p107
      %p110 = scmp.ne.s32.totalorder %s93, %s109
      %p111 = scmp.eq.s32.totalorder %s33, 0
      %p112 = por %p110, %p111
      %s113 = ssub.s32 %s27, %s34
      %p114 = scmp.eq.s32.totalorder %s113, 0
      %s116 = sadd.s32 %s115, 1
      %s117 = scalar_select %p114, %s115, %s116
      %p120 = pneg %p114
      %p121 = scmp.eq.s32.totalorder %s27, 1
      %p122 = por %p120, %p121
      %p123 = scmp.ne.s32.totalorder %s115, %s118
      %p124 = scmp.eq.s32.totalorder %s27, 0
      %p125 = por %p123, %p124
      %p126 = scmp.ne.s32.totalorder %s115, %s118
      %p127 = scmp.eq.s32.totalorder %s32, 1
      %p128 = por %p126, %p127
      %p129 = scmp.ne.s32.totalorder %s118, %s119
      %p130 = scmp.eq.s32.totalorder %s32, 0
      %p131 = por %p129, %p130
      %p132 = scmp.ne.s32.totalorder %s118, %s119
      %p133 = scmp.eq.s32.totalorder %s33, 1
      %p134 = por %p132, %p133
      %p136 = scmp.ne.s32.totalorder %s119, %s135
      %p137 = scmp.eq.s32.totalorder %s33, 0
      %p138 = por %p136, %p137
      %s139 = ssub.s32 %s27, %s34
      %p140 = scmp.eq.s32.totalorder %s139, 0
      %s142 = sadd.s32 %s141, 1
      %s143 = scalar_select %p140, %s141, %s142
      %p146 = pneg %p140
      %p147 = scmp.eq.s32.totalorder %s27, 1
      %p148 = por %p146, %p147
      %p149 = scmp.ne.s32.totalorder %s141, %s144
      %p150 = scmp.eq.s32.totalorder %s27, 0
      %p151 = por %p149, %p150
      %p152 = scmp.ne.s32.totalorder %s141, %s144
      %p153 = scmp.eq.s32.totalorder %s32, 1
      %p154 = por %p152, %p153
      %p155 = scmp.ne.s32.totalorder %s144, %s145
      %p156 = scmp.eq.s32.totalorder %s32, 0
      %p157 = por %p155, %p156
      %p158 = scmp.ne.s32.totalorder %s144, %s145
      %p159 = scmp.eq.s32.totalorder %s33, 1
      %p160 = por %p158, %p159
      %p162 = scmp.ne.s32.totalorder %s145, %s161
      %p163 = scmp.eq.s32.totalorder %s33, 0
      %p164 = por %p162, %p163
      %s166 = sadd.s32 %s165, 1
      %p169 = scmp.eq.s32.totalorder %s27, 1
      %p170 = scmp.ne.s32.totalorder %s165, %s167
      %p171 = scmp.eq.s32.totalorder %s27, 0
      %p172 = por %p170, %p171
      %p173 = scmp.ne.s32.totalorder %s165, %s167
      %p174 = scmp.eq.s32.totalorder %s32, 1
      %p175 = por %p173, %p174
      %p176 = scmp.ne.s32.totalorder %s167, %s168
      %p177 = scmp.eq.s32.totalorder %s32, 0
      %p178 = por %p176, %p177
      %p179 = scmp.ne.s32.totalorder %s167, %s168
      %p180 = scmp.eq.s32.totalorder %s33, 1
      %p181 = por %p179, %p180
      %p183 = scmp.ne.s32.totalorder %s168, %s182
      %p184 = scmp.eq.s32.totalorder %s33, 0
      %p185 = por %p183, %p184
      %s187 = sadd.s32 %s186, 1
      %p190 = scmp.eq.s32.totalorder %s27, 1
      %p191 = scmp.ne.s32.totalorder %s186, %s188
      %p192 = scmp.eq.s32.totalorder %s27, 0
      %p193 = por %p191, %p192
      %p194 = scmp.ne.s32.totalorder %s186, %s188
      %p195 = scmp.eq.s32.totalorder %s32, 1
      %p196 = por %p194, %p195
      %p197 = scmp.ne.s32.totalorder %s188, %s189
      %p198 = scmp.eq.s32.totalorder %s32, 0
      %p199 = por %p197, %p198
      %p200 = scmp.ne.s32.totalorder %s188, %s189
      %p201 = scmp.eq.s32.totalorder %s33, 1
      %p202 = por %p200, %p201
      %p204 = scmp.ne.s32.totalorder %s189, %s203
      %p205 = scmp.eq.s32.totalorder %s33, 0
      %p206 = por %p204, %p205
      %s208 = sadd.s32 %s207, 1
      %p211 = scmp.eq.s32.totalorder %s27, 1
      %p212 = scmp.ne.s32.totalorder %s207, %s209
      %p213 = scmp.eq.s32.totalorder %s27, 0
      %p214 = por %p212, %p213
      %p215 = scmp.ne.s32.totalorder %s207, %s209
      %p216 = scmp.eq.s32.totalorder %s32, 1
      %p217 = por %p215, %p216
      %p218 = scmp.ne.s32.totalorder %s209, %s210
      %p219 = scmp.eq.s32.totalorder %s32, 0
      %p220 = por %p218, %p219
      %p221 = scmp.ne.s32.totalorder %s209, %s210
      %p222 = scmp.eq.s32.totalorder %s33, 1
      %p223 = por %p221, %p222
      %p225 = scmp.ne.s32.totalorder %s210, %s224
      %p226 = scmp.eq.s32.totalorder %s33, 0
      %p227 = por %p225, %p226
      %s229 = sadd.s32 %s228, 1
      %p232 = scmp.eq.s32.totalorder %s27, 1
      %p233 = scmp.ne.s32.totalorder %s228, %s230
      %p234 = scmp.eq.s32.totalorder %s27, 0
      %p235 = por %p233, %p234
      %p236 = scmp.ne.s32.totalorder %s228, %s230
      %p237 = scmp.eq.s32.totalorder %s32, 1
      %p238 = por %p236, %p237
      %p239 = scmp.ne.s32.totalorder %s230, %s231
      %p240 = scmp.eq.s32.totalorder %s32, 0
      %p241 = por %p239, %p240
      %p242 = scmp.ne.s32.totalorder %s230, %s231
      %p243 = scmp.eq.s32.totalorder %s33, 1
      %p244 = por %p242, %p243
      %p246 = scmp.ne.s32.totalorder %s231, %s245
      %p247 = scmp.eq.s32.totalorder %s33, 0
      %p248 = por %p246, %p247
      %s249 = ssub.s32 %s27, %s34
      %p250 = scmp.eq.s32.totalorder %s249, 0
      %s252 = sadd.s32 %s251, 1
      %s253 = scalar_select %p250, %s251, %s252
      %p256 = pneg %p250
      %p257 = scmp.eq.s32.totalorder %s27, 1
      %p258 = por %p256, %p257
      %p259 = scmp.ne.s32.totalorder %s251, %s254
      %p260 = scmp.eq.s32.totalorder %s27, 0
      %p261 = por %p259, %p260
      %p262 = scmp.ne.s32.totalorder %s251, %s254
      %p263 = scmp.eq.s32.totalorder %s32, 1
      %p264 = por %p262, %p263
      %p265 = scmp.ne.s32.totalorder %s254, %s255
      %p266 = scmp.eq.s32.totalorder %s32, 0
      %p267 = por %p265, %p266
      %p268 = scmp.ne.s32.totalorder %s254, %s255
      %p269 = scmp.eq.s32.totalorder %s33, 1
      %p270 = por %p268, %p269
      %p272 = scmp.ne.s32.totalorder %s255, %s271
      %p273 = scmp.eq.s32.totalorder %s33, 0
      %p274 = por %p272, %p273
      %s275 = ssub.s32 %s27, %s34
      %p276 = scmp.eq.s32.totalorder %s275, 0
      %s278 = sadd.s32 %s277, 1
      %s279 = scalar_select %p276, %s277, %s278
      %p282 = pneg %p276
      %p283 = scmp.eq.s32.totalorder %s27, 1
      %p284 = por %p282, %p283
      %p285 = scmp.ne.s32.totalorder %s277, %s280
      %p286 = scmp.eq.s32.totalorder %s27, 0
      %p287 = por %p285, %p286
      %p288 = scmp.ne.s32.totalorder %s277, %s280
      %p289 = scmp.eq.s32.totalorder %s32, 1
      %p290 = por %p288, %p289
      %p291 = scmp.ne.s32.totalorder %s280, %s281
      %p292 = scmp.eq.s32.totalorder %s32, 0
      %p293 = por %p291, %p292
      %p294 = scmp.ne.s32.totalorder %s280, %s281
      %p295 = scmp.eq.s32.totalorder %s33, 1
      %p296 = por %p294, %p295
      %p298 = scmp.ne.s32.totalorder %s281, %s297
      %p299 = scmp.eq.s32.totalorder %s33, 0
      %p300 = por %p298, %p299
      %p301 = scmp.le.s32.totalorder 1, %s27
      %p302 = scmp.lt.s32.totalorder %s27, 3
      %p303 = pnand %p301, %p302
      %p304 = pneg %p303
      // Predicated region
      $region9: #{tpu_custom_call.1} parent=5 // pred_check
        _
      $region10: #{tpu_custom_call.1} parent=5 // pred_check_branch
        %306 = sbr.rel (%p303) target = $region12
      $region11: #{tpu_custom_call.1} parent=5 // pred_region
        %s307 = ssub.s32 %s27, 1
        // Predicated region
        $region13: #{tpu_custom_call.1} parent=11 // pred_check
          %p308 = pneg %p178
        $region14: #{tpu_custom_call.1} parent=11 // pred_check_branch
          %310 = sbr.rel (%p308) target = $region16
        $region15: #{tpu_custom_call.1} parent=11 // pred_region
          %s312 = ssub.s32 16384, 16384
          %313 = vsyncadd [#allocation6], %s312
          %s314 = sshll.u32 [#allocation5], 4
          %s315 = int_to_ptr.vmem [resolvable:$true] %s314
          %320 = dma.hbm_to_vmem [thread:$0]  %s5, 16384, %s315, [#allocation6], 128, 128, 8
        $region16: #{tpu_custom_call.1} parent=11 // pred_fallthru
          _
        // Predicated region
        $region17: #{tpu_custom_call.1} parent=11 // pred_check
          %p321 = pneg %p199
        $region18: #{tpu_custom_call.1} parent=11 // pred_check_branch
          %323 = sbr.rel (%p321) target = $region20
        $region19: #{tpu_custom_call.1} parent=11 // pred_region
          _
        $region20: #{tpu_custom_call.1} parent=11 // pred_fallthru
          _
        // Predicated region
        $region21: #{tpu_custom_call.1} parent=11 // pred_check
          %p324 = pneg %p220
        $region22: #{tpu_custom_call.1} parent=11 // pred_check_branch
          %326 = sbr.rel (%p324) target = $region24
        $region23: #{tpu_custom_call.1} parent=11 // pred_region
          _
        $region24: #{tpu_custom_call.1} parent=11 // pred_fallthru
          _
        // Predicated region
        $region25: #{tpu_custom_call.1} parent=11 // pred_check
          %p327 = pneg %p241
        $region26: #{tpu_custom_call.1} parent=11 // pred_check_branch
          %329 = sbr.rel (%p327) target = $region28
        $region27: #{tpu_custom_call.1} parent=11 // pred_region
          _
        $region28: #{tpu_custom_call.1} parent=11 // pred_fallthru
          _
      $region12: #{tpu_custom_call.1} parent=5 // pred_fallthru
        _
      %p330 = scmp.lt.s32.totalorder %s27, 2
      // Predicated region
      $region29: #{tpu_custom_call.1} parent=5 // pred_check
        %p331 = pneg %p330
      $region30: #{tpu_custom_call.1} parent=5 // pred_check_branch
        %333 = sbr.rel (%p331) target = $region32
      $region31: #{tpu_custom_call.1} parent=5 // pred_region
        // Predicated region
        $region33: #{tpu_custom_call.1} parent=31 // pred_check
          %p334 = pneg %p47
        $region34: #{tpu_custom_call.1} parent=31 // pred_check_branch
          %336 = sbr.rel (%p334) target = $region36
        $region35: #{tpu_custom_call.1} parent=31 // pred_region
          %p337 = scmp.lt.s32.totalorder %s27, 1
          %s338 = scalar_select %p337, %s27, 1
          %s339 = smul.addr %s338, 2
          %s340 = smul.addr %s339, 8
          %s341 = scalar_lea.vmem %s0, %s340
        $region36: #{tpu_custom_call.1} parent=31 // pred_fallthru
          _
        // Predicated region
        $region37: #{tpu_custom_call.1} parent=31 // pred_check
          %p342 = pneg %p73
        $region38: #{tpu_custom_call.1} parent=31 // pred_check_branch
          %344 = sbr.rel (%p342) target = $region40
        $region39: #{tpu_custom_call.1} parent=31 // pred_region
          %p345 = scmp.lt.s32.totalorder %s27, 1
          %s346 = scalar_select %p345, %s27, 1
          %s347 = smul.addr %s346, 2
          %s348 = smul.addr %s347, 8
          %s349 = scalar_lea.vmem %s1, %s348
        $region40: #{tpu_custom_call.1} parent=31 // pred_fallthru
          _
        // Predicated region
        $region41: #{tpu_custom_call.1} parent=31 // pred_check
          %p350 = pneg %p99
        $region42: #{tpu_custom_call.1} parent=31 // pred_check_branch
          %352 = sbr.rel (%p350) target = $region44
        $region43: #{tpu_custom_call.1} parent=31 // pred_region
          %s353 = sand.u32 %s89, 1
          %s354 = scalar_lea.sflag [#allocation3], %s353
          %s355 = sand.u32 %s89, 1
          %s356 = smul.addr %s355, 8
          %s357 = scalar_lea.vmem [#allocation2], %s356
          %s359 = ssub.s32 128, 128
          %360 = vsyncadd %s354, %s359
          %s361 = smul.addr %s27, 8
          %s362 = smul.addr %s361, 16
          %s363 = scalar_lea.hbm %s2, %s362
          %s365 = sshll.u32 %s357, 4
          %s366 = int_to_ptr.vmem [resolvable:$true] %s365
          %368 = dma.hbm_to_vmem [thread:$0]  %s363, 128, %s366, %s354
        $region44: #{tpu_custom_call.1} parent=31 // pred_fallthru
          _
        // Predicated region
        $region45: #{tpu_custom_call.1} parent=31 // pred_check
          %p369 = pneg %p125
        $region46: #{tpu_custom_call.1} parent=31 // pred_check_branch
          %371 = sbr.rel (%p369) target = $region48
        $region47: #{tpu_custom_call.1} parent=31 // pred_region
          %p372 = scmp.lt.s32.totalorder %s27, 1
          %s373 = scalar_select %p372, %s27, 1
          %s374 = smul.addr %s373, 6
          %s375 = smul.addr %s374, 8
          %s376 = scalar_lea.vmem %s3, %s375
        $region48: #{tpu_custom_call.1} parent=31 // pred_fallthru
          _
        // Predicated region
        $region49: #{tpu_custom_call.1} parent=31 // pred_check
          %p377 = pneg %p151
        $region50: #{tpu_custom_call.1} parent=31 // pred_check_branch
          %379 = sbr.rel (%p377) target = $region52
        $region51: #{tpu_custom_call.1} parent=31 // pred_region
          %p380 = scmp.lt.s32.totalorder %s27, 1
          %s381 = scalar_select %p380, %s27, 1
          %s382 = scalar_lea.vmem %s4, %s381
        $region52: #{tpu_custom_call.1} parent=31 // pred_fallthru
          _
      $region32: #{tpu_custom_call.1} parent=5 // pred_fallthru
        _
      %p383 = scmp.le.s32.totalorder 1, %s27
      %p384 = scmp.lt.s32.totalorder %s27, 3
      %p385 = pnand %p383, %p384
      %p386 = pneg %p385
      // Predicated region
      $region53: #{tpu_custom_call.1} parent=5 // pred_check
        _
      $region54: #{tpu_custom_call.1} parent=5 // pred_check_branch
        %388 = sbr.rel (%p385) target = $region56
      $region55: #{tpu_custom_call.1} parent=5 // pred_region
        %s389 = ssub.s32 %s27, 1
        %s390 = sand.u32 %s92, 1
        %s391 = scalar_lea.sflag [#allocation3], %s390
        %s392 = sand.u32 %s92, 1
        %s393 = smul.addr %s392, 8
        %s394 = scalar_lea.vmem [#allocation2], %s393
        // Predicated region
        $region57: #{tpu_custom_call.1} parent=55 // pred_check
          %p395 = pneg %p105
        $region58: #{tpu_custom_call.1} parent=55 // pred_check_branch
          %397 = sbr.rel (%p395) target = $region60
        $region59: #{tpu_custom_call.1} parent=55 // pred_region
          %398 = dma.done %s391, 128
        $region60: #{tpu_custom_call.1} parent=55 // pred_fallthru
          _
        // Predicated region
        $region61: #{tpu_custom_call.1} parent=55 // pred_check
          %p399 = pneg %p178
        $region62: #{tpu_custom_call.1} parent=55 // pred_check_branch
          %401 = sbr.rel (%p399) target = $region64
        $region63: #{tpu_custom_call.1} parent=55 // pred_region
          %402 = dma.done [#allocation6], 16384
        $region64: #{tpu_custom_call.1} parent=55 // pred_fallthru
          _
        %p403 = scmp.lt.s32.totalorder %s32, 1
        %s404 = scalar_select %p403, %s32, 1
        %s405 = smul.addr %s404, 2
        %s406 = smul.addr %s405, 8
        %s407 = scalar_lea.vmem %s0, %s406
        %p408 = pneg %p53
        %p409 = pneg %p50
        %p410 = scmp.lt.s32.totalorder %s32, 1
        %s411 = scalar_select %p410, %s32, 1
        %s412 = smul.addr %s411, 2
        %s413 = smul.addr %s412, 8
        %s414 = scalar_lea.vmem %s1, %s413
        %p415 = pneg %p79
        %p416 = pneg %p76
        %s417 = sand.u32 %s92, 1
        %s418 = scalar_lea.sflag [#allocation3], %s417
        %s419 = sand.u32 %s92, 1
        %s420 = smul.addr %s419, 8
        %s421 = scalar_lea.vmem [#allocation2], %s420
        %p422 = pneg %p105
        %p423 = pneg %p102
        %p424 = scmp.lt.s32.totalorder %s32, 1
        %s425 = scalar_select %p424, %s32, 1
        %s426 = smul.addr %s425, 6
        %s427 = smul.addr %s426, 8
        %s428 = scalar_lea.vmem %s3, %s427
        %p429 = pneg %p131
        %p430 = pneg %p128
        %p431 = scmp.lt.s32.totalorder %s32, 1
        %s432 = scalar_select %p431, %s32, 1
        %s433 = scalar_lea.vmem %s4, %s432
        %p434 = pneg %p157
        %p435 = pneg %p154
        %p436 = pneg %p178
        %p437 = pneg %p175
        %p438 = pneg %p199
        %p439 = pneg %p196
        %p440 = pneg %p220
        %p441 = pneg %p217
        %p442 = pneg %p241
        %p443 = pneg %p238
        %p444 = pneg %p267
        %p445 = pneg %p264
        %s446 = sand.u32 %s254, 1
        %s447 = scalar_lea.sflag [#allocation4], %s446
        %s448 = sand.u32 %s254, 1
        %s449 = scalar_lea.vmem [#allocation7], %s448
        %p450 = pneg %p293
        %p451 = pneg %p290
        %s452 = sand.u32 %s280, 1
        %s453 = scalar_lea.sflag [#allocation9], %s452
        %s454 = sand.u32 %s280, 1
        %s455 = scalar_lea.vmem [#allocation8], %s454
        %p456 = scmp.lt.s32.totalorder %s32, 1
        %s457 = scalar_select %p456, %s32, 1
        %s458 = smul.addr %s457, 2
        %s459 = smul.addr %s458, 8
        %s460 = scalar_lea.vmem %s0, %s459
        %p461 = scmp.lt.s32.totalorder %s32, 1
        %s462 = scalar_select %p461, %s32, 1
        %s463 = smul.addr %s462, 2
        %s464 = smul.addr %s463, 8
        %s465 = scalar_lea.vmem %s1, %s464
        %p466 = scmp.lt.s32.totalorder %s32, 1
        %s467 = scalar_select %p466, %s32, 1
        %s468 = smul.addr %s467, 6
        %s469 = smul.addr %s468, 8
        %s470 = scalar_lea.vmem %s3, %s469
        %p471 = scmp.lt.s32.totalorder %s32, 1
        %s472 = scalar_select %p471, %s32, 1
        %s473 = scalar_lea.vmem %s4, %s472
        %v474 = vld [vmem:[%s394] sm:$0xff]
        %v475 = vld [vmem:[#allocation5] sm:$0xff]
        %v476 = vld [vmem:[#allocation5 + $0x8] sm:$0xff]
        %v477 = vld [vmem:[#allocation5 + $0x10] sm:$0xff]
        %v478 = vld [vmem:[#allocation5 + $0x18] sm:$0xff]
        %v479 = vld [vmem:[#allocation5 + $0x20] sm:$0xff]
        %v480 = vld [vmem:[#allocation5 + $0x28] sm:$0xff]
        %v481 = vld [vmem:[#allocation5 + $0x30] sm:$0xff]
        %v482 = vld [vmem:[#allocation5 + $0x38] sm:$0xff]
        %v483 = vld [vmem:[#allocation5 + $0x40] sm:$0xff]
        %v484 = vld [vmem:[#allocation5 + $0x48] sm:$0xff]
        %v485 = vld [vmem:[#allocation5 + $0x50] sm:$0xff]
        %v486 = vld [vmem:[#allocation5 + $0x58] sm:$0xff]
        %v487 = vld [vmem:[#allocation5 + $0x60] sm:$0xff]
        %v488 = vld [vmem:[#allocation5 + $0x68] sm:$0xff]
        %v489 = vld [vmem:[#allocation5 + $0x70] sm:$0xff]
        %v490 = vld [vmem:[#allocation5 + $0x78] sm:$0xff]
        %v491 = vld [vmem:[#allocation5 + $0x80] sm:$0xff]
        %v492 = vld [vmem:[#allocation5 + $0x88] sm:$0xff]
        %v493 = vld [vmem:[#allocation5 + $0x90] sm:$0xff]
        %v494 = vld [vmem:[#allocation5 + $0x98] sm:$0xff]
        %v495 = vld [vmem:[#allocation5 + $0xa0] sm:$0xff]
        %v496 = vld [vmem:[#allocation5 + $0xa8] sm:$0xff]
        %v497 = vld [vmem:[#allocation5 + $0xb0] sm:$0xff]
        %v498 = vld [vmem:[#allocation5 + $0xb8] sm:$0xff]
        %v499 = vld [vmem:[#allocation5 + $0xc0] sm:$0xff]
        %v500 = vld [vmem:[#allocation5 + $0xc8] sm:$0xff]
        %v501 = vld [vmem:[#allocation5 + $0xd0] sm:$0xff]
        %v502 = vld [vmem:[#allocation5 + $0xd8] sm:$0xff]
        %v503 = vld [vmem:[#allocation5 + $0xe0] sm:$0xff]
        %v504 = vld [vmem:[#allocation5 + $0xe8] sm:$0xff]
        %v505 = vld [vmem:[#allocation5 + $0xf0] sm:$0xff]
        %v506 = vld [vmem:[#allocation5 + $0xf8] sm:$0xff]
        %v507 = vld [vmem:[#allocation5 + $0x100] sm:$0xff]
        %v508 = vld [vmem:[#allocation5 + $0x108] sm:$0xff]
        %v509 = vld [vmem:[#allocation5 + $0x110] sm:$0xff]
        %v510 = vld [vmem:[#allocation5 + $0x118] sm:$0xff]
        %v511 = vld [vmem:[#allocation5 + $0x120] sm:$0xff]
        %v512 = vld [vmem:[#allocation5 + $0x128] sm:$0xff]
        %v513 = vld [vmem:[#allocation5 + $0x130] sm:$0xff]
        %v514 = vld [vmem:[#allocation5 + $0x138] sm:$0xff]
        %v515 = vld [vmem:[#allocation5 + $0x140] sm:$0xff]
        %v516 = vld [vmem:[#allocation5 + $0x148] sm:$0xff]
        %v517 = vld [vmem:[#allocation5 + $0x150] sm:$0xff]
        %v518 = vld [vmem:[#allocation5 + $0x158] sm:$0xff]
        %v519 = vld [vmem:[#allocation5 + $0x160] sm:$0xff]
        %v520 = vld [vmem:[#allocation5 + $0x168] sm:$0xff]
        %v521 = vld [vmem:[#allocation5 + $0x170] sm:$0xff]
        %v522 = vld [vmem:[#allocation5 + $0x178] sm:$0xff]
        %v523 = vld [vmem:[#allocation5 + $0x180] sm:$0xff]
        %v524 = vld [vmem:[#allocation5 + $0x188] sm:$0xff]
        %v525 = vld [vmem:[#allocation5 + $0x190] sm:$0xff]
        %v526 = vld [vmem:[#allocation5 + $0x198] sm:$0xff]
        %v527 = vld [vmem:[#allocation5 + $0x1a0] sm:$0xff]
        %v528 = vld [vmem:[#allocation5 + $0x1a8] sm:$0xff]
        %v529 = vld [vmem:[#allocation5 + $0x1b0] sm:$0xff]
        %v530 = vld [vmem:[#allocation5 + $0x1b8] sm:$0xff]
        %v531 = vld [vmem:[#allocation5 + $0x1c0] sm:$0xff]
        %v532 = vld [vmem:[#allocation5 + $0x1c8] sm:$0xff]
        %v533 = vld [vmem:[#allocation5 + $0x1d0] sm:$0xff]
        %v534 = vld [vmem:[#allocation5 + $0x1d8] sm:$0xff]
        %v535 = vld [vmem:[#allocation5 + $0x1e0] sm:$0xff]
        %v536 = vld [vmem:[#allocation5 + $0x1e8] sm:$0xff]
        %v537 = vld [vmem:[#allocation5 + $0x1f0] sm:$0xff]
        %v538 = vld [vmem:[#allocation5 + $0x1f8] sm:$0xff]
        %v539 = vld [vmem:[#allocation5 + $0x200] sm:$0xff]
        %v540 = vld [vmem:[#allocation5 + $0x208] sm:$0xff]
        %v541 = vld [vmem:[#allocation5 + $0x210] sm:$0xff]
        %v542 = vld [vmem:[#allocation5 + $0x218] sm:$0xff]
        %v543 = vld [vmem:[#allocation5 + $0x220] sm:$0xff]
        %v544 = vld [vmem:[#allocation5 + $0x228] sm:$0xff]
        %v545 = vld [vmem:[#allocation5 + $0x230] sm:$0xff]
        %v546 = vld [vmem:[#allocation5 + $0x238] sm:$0xff]
        %v547 = vld [vmem:[#allocation5 + $0x240] sm:$0xff]
        %v548 = vld [vmem:[#allocation5 + $0x248] sm:$0xff]
        %v549 = vld [vmem:[#allocation5 + $0x250] sm:$0xff]
        %v550 = vld [vmem:[#allocation5 + $0x258] sm:$0xff]
        %v551 = vld [vmem:[#allocation5 + $0x260] sm:$0xff]
        %v552 = vld [vmem:[#allocation5 + $0x268] sm:$0xff]
        %v553 = vld [vmem:[#allocation5 + $0x270] sm:$0xff]
        %v554 = vld [vmem:[#allocation5 + $0x278] sm:$0xff]
        %v555 = vld [vmem:[#allocation5 + $0x280] sm:$0xff]
        %v556 = vld [vmem:[#allocation5 + $0x288] sm:$0xff]
        %v557 = vld [vmem:[#allocation5 + $0x290] sm:$0xff]
        %v558 = vld [vmem:[#allocation5 + $0x298] sm:$0xff]
        %v559 = vld [vmem:[#allocation5 + $0x2a0] sm:$0xff]
        %v560 = vld [vmem:[#allocation5 + $0x2a8] sm:$0xff]
        %v561 = vld [vmem:[#allocation5 + $0x2b0] sm:$0xff]
        %v562 = vld [vmem:[#allocation5 + $0x2b8] sm:$0xff]
        %v563 = vld [vmem:[#allocation5 + $0x2c0] sm:$0xff]
        %v564 = vld [vmem:[#allocation5 + $0x2c8] sm:$0xff]
        %v565 = vld [vmem:[#allocation5 + $0x2d0] sm:$0xff]
        %v566 = vld [vmem:[#allocation5 + $0x2d8] sm:$0xff]
        %v567 = vld [vmem:[#allocation5 + $0x2e0] sm:$0xff]
        %v568 = vld [vmem:[#allocation5 + $0x2e8] sm:$0xff]
        %v569 = vld [vmem:[#allocation5 + $0x2f0] sm:$0xff]
        %v570 = vld [vmem:[#allocation5 + $0x2f8] sm:$0xff]
        %v571 = vld [vmem:[#allocation5 + $0x300] sm:$0xff]
        %v572 = vld [vmem:[#allocation5 + $0x308] sm:$0xff]
        %v573 = vld [vmem:[#allocation5 + $0x310] sm:$0xff]
        %v574 = vld [vmem:[#allocation5 + $0x318] sm:$0xff]
        %v575 = vld [vmem:[#allocation5 + $0x320] sm:$0xff]
        %v576 = vld [vmem:[#allocation5 + $0x328] sm:$0xff]
        %v577 = vld [vmem:[#allocation5 + $0x330] sm:$0xff]
        %v578 = vld [vmem:[#allocation5 + $0x338] sm:$0xff]
        %v579 = vld [vmem:[#allocation5 + $0x340] sm:$0xff]
        %v580 = vld [vmem:[#allocation5 + $0x348] sm:$0xff]
        %v581 = vld [vmem:[#allocation5 + $0x350] sm:$0xff]
        %v582 = vld [vmem:[#allocation5 + $0x358] sm:$0xff]
        %v583 = vld [vmem:[#allocation5 + $0x360] sm:$0xff]
        %v584 = vld [vmem:[#allocation5 + $0x368] sm:$0xff]
        %v585 = vld [vmem:[#allocation5 + $0x370] sm:$0xff]
        %v586 = vld [vmem:[#allocation5 + $0x378] sm:$0xff]
        %v587 = vld [vmem:[#allocation5 + $0x380] sm:$0xff]
        %v588 = vld [vmem:[#allocation5 + $0x388] sm:$0xff]
        %v589 = vld [vmem:[#allocation5 + $0x390] sm:$0xff]
        %v590 = vld [vmem:[#allocation5 + $0x398] sm:$0xff]
        %v591 = vld [vmem:[#allocation5 + $0x3a0] sm:$0xff]
        %v592 = vld [vmem:[#allocation5 + $0x3a8] sm:$0xff]
        %v593 = vld [vmem:[#allocation5 + $0x3b0] sm:$0xff]
        %v594 = vld [vmem:[#allocation5 + $0x3b8] sm:$0xff]
        %v595 = vld [vmem:[#allocation5 + $0x3c0] sm:$0xff]
        %v596 = vld [vmem:[#allocation5 + $0x3c8] sm:$0xff]
        %v597 = vld [vmem:[#allocation5 + $0x3d0] sm:$0xff]
        %v598 = vld [vmem:[#allocation5 + $0x3d8] sm:$0xff]
        %v599 = vld [vmem:[#allocation5 + $0x3e0] sm:$0xff]
        %v600 = vld [vmem:[#allocation5 + $0x3e8] sm:$0xff]
        %v601 = vld [vmem:[#allocation5 + $0x3f0] sm:$0xff]
        %v602 = vld [vmem:[#allocation5 + $0x3f8] sm:$0xff]
        %v603 = vld [vmem:[%s7] sm:$0x1]
        %v605 = vlaneseq
        %v606 = vshrl.u32 %v605, 7
        %v607 = vsub.s32 0, %v606
        %v608 = vrot.slane %v474, %v607
        %v609 = vlaneseq
        %v610 = vshrl.u32 %v609, 7
        %v611 = vsub.s32 1, %v610
        %v612 = vrot.slane %v474, %v611
        %v613 = vlaneseq
        %v614 = vshrl.u32 %v613, 7
        %v615 = vsub.s32 2, %v614
        %v616 = vrot.slane %v474, %v615
        %v617 = vlaneseq
        %v618 = vshrl.u32 %v617, 7
        %v619 = vsub.s32 3, %v618
        %v620 = vrot.slane %v474, %v619
        %v621 = vlaneseq
        %v622 = vshrl.u32 %v621, 7
        %v623 = vsub.s32 4, %v622
        %v624 = vrot.slane %v474, %v623
        %v625 = vlaneseq
        %v626 = vshrl.u32 %v625, 7
        %v627 = vsub.s32 5, %v626
        %v628 = vrot.slane %v474, %v627
        %v629 = vlaneseq
        %v630 = vshrl.u32 %v629, 7
        %v631 = vsub.s32 6, %v630
        %v632 = vrot.slane %v474, %v631
        %v633 = vlaneseq
        %v634 = vshrl.u32 %v633, 7
        %v635 = vsub.s32 7, %v634
        %v636 = vrot.slane %v474, %v635
        %645 = vmatprep.subr.mxu0 0.0
        %646 = vmatpush1.msra.mxu0 %v475
        %647 = vmatprep.subr.mxu0 0.0
        %648 = vmatpush1.msra.mxu0 %v476
        %649 = vmatprep.subr.mxu0 0.0
        %650 = vmatpush1.msra.mxu0 %v477
        %651 = vmatprep.subr.mxu0 0.0
        %652 = vmatpush1.msra.mxu0 %v478
        %653 = vmatprep.subr.mxu0 0.0
        %654 = vmatpush1.msra.mxu0 %v479
        %655 = vmatprep.subr.mxu0 0.0
        %656 = vmatpush1.msra.mxu0 %v480
        %657 = vmatprep.subr.mxu0 0.0
        %658 = vmatpush1.msra.mxu0 %v481
        %659 = vmatprep.subr.mxu0 0.0
        %660 = vmatpush1.msra.mxu0 %v482
        %661 = vmatprep.subr.mxu0 0.0
        %662 = vmatpush1.msra.mxu0 %v483
        %663 = vmatprep.subr.mxu0 0.0
        %664 = vmatpush1.msra.mxu0 %v484
        %665 = vmatprep.subr.mxu0 0.0
        %666 = vmatpush1.msra.mxu0 %v485
        %667 = vmatprep.subr.mxu0 0.0
        %668 = vmatpush1.msra.mxu0 %v486
        %669 = vmatprep.subr.mxu0 0.0
        %670 = vmatpush1.msra.mxu0 %v487
        %671 = vmatprep.subr.mxu0 0.0
        %672 = vmatpush1.msra.mxu0 %v488
        %673 = vmatprep.subr.mxu0 0.0
        %674 = vmatpush1.msra.mxu0 %v489
        %675 = vmatprep.subr.mxu0 0.0
        %676 = vmatpush1.msra.mxu0 %v490
        %677 = vmatprep.subr.mxu0 0.0
        %678 = vmatpush1.msra.mxu0 %v491
        %679 = vmatprep.subr.mxu0 0.0
        %680 = vmatpush1.msra.mxu0 %v492
        %681 = vmatprep.subr.mxu0 0.0
        %682 = vmatpush1.msra.mxu0 %v493
        %683 = vmatprep.subr.mxu0 0.0
        %684 = vmatpush1.msra.mxu0 %v494
        %685 = vmatprep.subr.mxu0 0.0
        %686 = vmatpush1.msra.mxu0 %v495
        %687 = vmatprep.subr.mxu0 0.0
        %688 = vmatpush1.msra.mxu0 %v496
        %689 = vmatprep.subr.mxu0 0.0
        %690 = vmatpush1.msra.mxu0 %v497
        %691 = vmatprep.subr.mxu0 0.0
        %692 = vmatpush1.msra.mxu0 %v498
        %693 = vmatprep.subr.mxu0 0.0
        %694 = vmatpush1.msra.mxu0 %v499
        %695 = vmatprep.subr.mxu0 0.0
        %696 = vmatpush1.msra.mxu0 %v500
        %697 = vmatprep.subr.mxu0 0.0
        %698 = vmatpush1.msra.mxu0 %v501
        %699 = vmatprep.subr.mxu0 0.0
        %700 = vmatpush1.msra.mxu0 %v502
        %701 = vmatprep.subr.mxu0 0.0
        %702 = vmatpush1.msra.mxu0 %v503
        %703 = vmatprep.subr.mxu0 0.0
        %704 = vmatpush1.msra.mxu0 %v504
        %705 = vmatprep.subr.mxu0 0.0
        %706 = vmatpush1.msra.mxu0 %v505
        %707 = vmatprep.subr.mxu0 0.0
        %708 = vmatpush1.msra.mxu0 %v506
        %709 = vmatprep.mubr.f32.mxu0 %v612
        %710 = vmatmul.mubr.f32.gmra.mrb[0].mxu0 %v608
        %v711 = vpop.f32.mrb[0].mxu0
        %v712 = vadd.f32 %v603, %v711
        %v713 = vpop.f32.mrb[0].mxu0
        %714 = vdwg.mxu0
        %715 = vmatprep.subr.mxu0 0.0
        %716 = vmatpush1.msra.mxu0 %v507
        %717 = vmatprep.subr.mxu0 0.0
        %718 = vmatpush1.msra.mxu0 %v508
        %719 = vmatprep.subr.mxu0 0.0
        %720 = vmatpush1.msra.mxu0 %v509
        %721 = vmatprep.subr.mxu0 0.0
        %722 = vmatpush1.msra.mxu0 %v510
        %723 = vmatprep.subr.mxu0 0.0
        %724 = vmatpush1.msra.mxu0 %v511
        %725 = vmatprep.subr.mxu0 0.0
        %726 = vmatpush1.msra.mxu0 %v512
        %727 = vmatprep.subr.mxu0 0.0
        %728 = vmatpush1.msra.mxu0 %v513
        %729 = vmatprep.subr.mxu0 0.0
        %730 = vmatpush1.msra.mxu0 %v514
        %731 = vmatprep.subr.mxu0 0.0
        %732 = vmatpush1.msra.mxu0 %v515
        %733 = vmatprep.subr.mxu0 0.0
        %734 = vmatpush1.msra.mxu0 %v516
        %735 = vmatprep.subr.mxu0 0.0
        %736 = vmatpush1.msra.mxu0 %v517
        %737 = vmatprep.subr.mxu0 0.0
        %738 = vmatpush1.msra.mxu0 %v518
        %739 = vmatprep.subr.mxu0 0.0
        %740 = vmatpush1.msra.mxu0 %v519
        %741 = vmatprep.subr.mxu0 0.0
        %742 = vmatpush1.msra.mxu0 %v520
        %743 = vmatprep.subr.mxu0 0.0
        %744 = vmatpush1.msra.mxu0 %v521
        %745 = vmatprep.subr.mxu0 0.0
        %746 = vmatpush1.msra.mxu0 %v522
        %747 = vmatprep.subr.mxu0 0.0
        %748 = vmatpush1.msra.mxu0 %v523
        %749 = vmatprep.subr.mxu0 0.0
        %750 = vmatpush1.msra.mxu0 %v524
        %751 = vmatprep.subr.mxu0 0.0
        %752 = vmatpush1.msra.mxu0 %v525
        %753 = vmatprep.subr.mxu0 0.0
        %754 = vmatpush1.msra.mxu0 %v526
        %755 = vmatprep.subr.mxu0 0.0
        %756 = vmatpush1.msra.mxu0 %v527
        %757 = vmatprep.subr.mxu0 0.0
        %758 = vmatpush1.msra.mxu0 %v528
        %759 = vmatprep.subr.mxu0 0.0
        %760 = vmatpush1.msra.mxu0 %v529
        %761 = vmatprep.subr.mxu0 0.0
        %762 = vmatpush1.msra.mxu0 %v530
        %763 = vmatprep.subr.mxu0 0.0
        %764 = vmatpush1.msra.mxu0 %v531
        %765 = vmatprep.subr.mxu0 0.0
        %766 = vmatpush1.msra.mxu0 %v532
        %767 = vmatprep.subr.mxu0 0.0
        %768 = vmatpush1.msra.mxu0 %v533
        %769 = vmatprep.subr.mxu0 0.0
        %770 = vmatpush1.msra.mxu0 %v534
        %771 = vmatprep.subr.mxu0 0.0
        %772 = vmatpush1.msra.mxu0 %v535
        %773 = vmatprep.subr.mxu0 0.0
        %774 = vmatpush1.msra.mxu0 %v536
        %775 = vmatprep.subr.mxu0 0.0
        %776 = vmatpush1.msra.mxu0 %v537
        %777 = vmatprep.subr.mxu0 0.0
        %778 = vmatpush1.msra.mxu0 %v538
        %779 = vmatprep.mubr.f32.mxu0 %v620
        %780 = vmatmul.mubr.f32.gmra.mrb[0].mxu0 %v616
        %v781 = vpop.f32.mrb[0].mxu0
        %v782 = vadd.f32 %v712, %v781
        %v783 = vpop.f32.mrb[0].mxu0
        %784 = vdwg.mxu0
        %785 = vmatprep.subr.mxu0 0.0
        %786 = vmatpush1.msra.mxu0 %v539
        %787 = vmatprep.subr.mxu0 0.0
        %788 = vmatpush1.msra.mxu0 %v540
        %789 = vmatprep.subr.mxu0 0.0
        %790 = vmatpush1.msra.mxu0 %v541
        %791 = vmatprep.subr.mxu0 0.0
        %792 = vmatpush1.msra.mxu0 %v542
        %793 = vmatprep.subr.mxu0 0.0
        %794 = vmatpush1.msra.mxu0 %v543
        %795 = vmatprep.subr.mxu0 0.0
        %796 = vmatpush1.msra.mxu0 %v544
        %797 = vmatprep.subr.mxu0 0.0
        %798 = vmatpush1.msra.mxu0 %v545
        %799 = vmatprep.subr.mxu0 0.0
        %800 = vmatpush1.msra.mxu0 %v546
        %801 = vmatprep.subr.mxu0 0.0
        %802 = vmatpush1.msra.mxu0 %v547
        %803 = vmatprep.subr.mxu0 0.0
        %804 = vmatpush1.msra.mxu0 %v548
        %805 = vmatprep.subr.mxu0 0.0
        %806 = vmatpush1.msra.mxu0 %v549
        %807 = vmatprep.subr.mxu0 0.0
        %808 = vmatpush1.msra.mxu0 %v550
        %809 = vmatprep.subr.mxu0 0.0
        %810 = vmatpush1.msra.mxu0 %v551
        %811 = vmatprep.subr.mxu0 0.0
        %812 = vmatpush1.msra.mxu0 %v552
        %813 = vmatprep.subr.mxu0 0.0
        %814 = vmatpush1.msra.mxu0 %v553
        %815 = vmatprep.subr.mxu0 0.0
        %816 = vmatpush1.msra.mxu0 %v554
        %817 = vmatprep.subr.mxu0 0.0
        %818 = vmatpush1.msra.mxu0 %v555
        %819 = vmatprep.subr.mxu0 0.0
        %820 = vmatpush1.msra.mxu0 %v556
        %821 = vmatprep.subr.mxu0 0.0
        %822 = vmatpush1.msra.mxu0 %v557
        %823 = vmatprep.subr.mxu0 0.0
        %824 = vmatpush1.msra.mxu0 %v558
        %825 = vmatprep.subr.mxu0 0.0
        %826 = vmatpush1.msra.mxu0 %v559
        %827 = vmatprep.subr.mxu0 0.0
        %828 = vmatpush1.msra.mxu0 %v560
        %829 = vmatprep.subr.mxu0 0.0
        %830 = vmatpush1.msra.mxu0 %v561
        %831 = vmatprep.subr.mxu0 0.0
        %832 = vmatpush1.msra.mxu0 %v562
        %833 = vmatprep.subr.mxu0 0.0
        %834 = vmatpush1.msra.mxu0 %v563
        %835 = vmatprep.subr.mxu0 0.0
        %836 = vmatpush1.msra.mxu0 %v564
        %837 = vmatprep.subr.mxu0 0.0
        %838 = vmatpush1.msra.mxu0 %v565
        %839 = vmatprep.subr.mxu0 0.0
        %840 = vmatpush1.msra.mxu0 %v566
        %841 = vmatprep.subr.mxu0 0.0
        %842 = vmatpush1.msra.mxu0 %v567
        %843 = vmatprep.subr.mxu0 0.0
        %844 = vmatpush1.msra.mxu0 %v568
        %845 = vmatprep.subr.mxu0 0.0
        %846 = vmatpush1.msra.mxu0 %v569
        %847 = vmatprep.subr.mxu0 0.0
        %848 = vmatpush1.msra.mxu0 %v570
        %849 = vmatprep.mubr.f32.mxu0 %v628
        %850 = vmatmul.mubr.f32.gmra.mrb[0].mxu0 %v624
        %v851 = vpop.f32.mrb[0].mxu0
        %v852 = vadd.f32 %v782, %v851
        %v853 = vpop.f32.mrb[0].mxu0
        %854 = vdwg.mxu0
        %855 = vmatprep.subr.mxu0 0.0
        %856 = vmatpush1.msra.mxu0 %v571
        %857 = vmatprep.subr.mxu0 0.0
        %858 = vmatpush1.msra.mxu0 %v572
        %859 = vmatprep.subr.mxu0 0.0
        %860 = vmatpush1.msra.mxu0 %v573
        %861 = vmatprep.subr.mxu0 0.0
        %862 = vmatpush1.msra.mxu0 %v574
        %863 = vmatprep.subr.mxu0 0.0
        %864 = vmatpush1.msra.mxu0 %v575
        %865 = vmatprep.subr.mxu0 0.0
        %866 = vmatpush1.msra.mxu0 %v576
        %867 = vmatprep.subr.mxu0 0.0
        %868 = vmatpush1.msra.mxu0 %v577
        %869 = vmatprep.subr.mxu0 0.0
        %870 = vmatpush1.msra.mxu0 %v578
        %871 = vmatprep.subr.mxu0 0.0
        %872 = vmatpush1.msra.mxu0 %v579
        %873 = vmatprep.subr.mxu0 0.0
        %874 = vmatpush1.msra.mxu0 %v580
        %875 = vmatprep.subr.mxu0 0.0
        %876 = vmatpush1.msra.mxu0 %v581
        %877 = vmatprep.subr.mxu0 0.0
        %878 = vmatpush1.msra.mxu0 %v582
        %879 = vmatprep.subr.mxu0 0.0
        %880 = vmatpush1.msra.mxu0 %v583
        %881 = vmatprep.subr.mxu0 0.0
        %882 = vmatpush1.msra.mxu0 %v584
        %883 = vmatprep.subr.mxu0 0.0
        %884 = vmatpush1.msra.mxu0 %v585
        %885 = vmatprep.subr.mxu0 0.0
        %886 = vmatpush1.msra.mxu0 %v586
        %887 = vmatprep.subr.mxu0 0.0
        %888 = vmatpush1.msra.mxu0 %v587
        %889 = vmatprep.subr.mxu0 0.0
        %890 = vmatpush1.msra.mxu0 %v588
        %891 = vmatprep.subr.mxu0 0.0
        %892 = vmatpush1.msra.mxu0 %v589
        %893 = vmatprep.subr.mxu0 0.0
        %894 = vmatpush1.msra.mxu0 %v590
        %895 = vmatprep.subr.mxu0 0.0
        %896 = vmatpush1.msra.mxu0 %v591
        %897 = vmatprep.subr.mxu0 0.0
        %898 = vmatpush1.msra.mxu0 %v592
        %899 = vmatprep.subr.mxu0 0.0
        %900 = vmatpush1.msra.mxu0 %v593
        %901 = vmatprep.subr.mxu0 0.0
        %902 = vmatpush1.msra.mxu0 %v594
        %903 = vmatprep.subr.mxu0 0.0
        %904 = vmatpush1.msra.mxu0 %v595
        %905 = vmatprep.subr.mxu0 0.0
        %906 = vmatpush1.msra.mxu0 %v596
        %907 = vmatprep.subr.mxu0 0.0
        %908 = vmatpush1.msra.mxu0 %v597
        %909 = vmatprep.subr.mxu0 0.0
        %910 = vmatpush1.msra.mxu0 %v598
        %911 = vmatprep.subr.mxu0 0.0
        %912 = vmatpush1.msra.mxu0 %v599
        %913 = vmatprep.subr.mxu0 0.0
        %914 = vmatpush1.msra.mxu0 %v600
        %915 = vmatprep.subr.mxu0 0.0
        %916 = vmatpush1.msra.mxu0 %v601
        %917 = vmatprep.subr.mxu0 0.0
        %918 = vmatpush1.msra.mxu0 %v602
        %919 = vmatprep.mubr.f32.mxu0 %v636
        %920 = vmatmul.mubr.f32.gmra.mrb[0].mxu0 %v632
        %v921 = vpop.f32.mrb[0].mxu0
        %v922 = vadd.f32 %v852, %v921
        %v923 = vpop.f32.mrb[0].mxu0
        %924 = vdwg.mxu0
        %v925 = vld [vmem:[%s6] sm:$0xff]
        %v926 = vld [vmem:[%s6 + $0x8] sm:$0xff]
        %v927 = vld [vmem:[%s6 + $0x10] sm:$0xff]
        %v928 = vld [vmem:[%s6 + $0x18] sm:$0x7f]
        %v929 = vld [vmem:[%s8] sm:$0x1]
        %v930 = vld [vmem:[%s465] sm:$0xff]
        %v931 = vld [vmem:[%s465 + $0x8] sm:$0xff]
        %v932 = vlaneseq
        %v933 = vshrl.u32 %v932, 7
        %v934 = vsub.s32 0, %v933
        %v935 = vrot.slane %v922, %v934
        %v936 = vadd.f32 %v935, %v930
        %v937 = vadd.f32 %v935, %v931
        %v938 = vld [vmem:[%s470] sm:$0xff]
        %v939 = vld [vmem:[%s470 + $0x8] sm:$0xff]
        %941 = vset.pattern.permute.xlu0 0
        %942 = vperm.xlu0 %941, %v938
        %v943 = vpop.permute.xlu0 %942
        %946 = vset.pattern.permute.xlu0 0
        %947 = vperm.xlu0 %946, %v939
        %v948 = vpop.permute.xlu0 %947
        %v950 = vlaneseq
        %v951 = vshrl.u32 %v950, 7
        %v952 = vsub.s32 0, %v951
        %v953 = vrot.slane %v925, %v952
        %v954 = vmul.f32 %v943, %v953
        %v955 = vmul.f32 %v948, %v953
        %v956 = vadd.f32 %v936, %v954
        %v957 = vadd.f32 %v937, %v955
        %v958 = vld [vmem:[%s470 + $0x1] sm:$0xff]
        %v959 = vld [vmem:[%s470 + $0x9] sm:$0xff]
        %961 = vset.pattern.permute.xlu0 0
        %962 = vperm.xlu0 %961, %v958
        %v963 = vpop.permute.xlu0 %962
        %966 = vset.pattern.permute.xlu0 0
        %967 = vperm.xlu0 %966, %v959
        %v968 = vpop.permute.xlu0 %967
        %v970 = vlaneseq
        %v971 = vshrl.u32 %v970, 7
        %v972 = vsub.s32 1, %v971
        %v973 = vrot.slane %v925, %v972
        %v974 = vmul.f32 %v963, %v973
        %v975 = vmul.f32 %v968, %v973
        %v976 = vadd.f32 %v956, %v974
        %v977 = vadd.f32 %v957, %v975
        %v978 = vld [vmem:[%s470 + $0x2] sm:$0xff]
        %v979 = vld [vmem:[%s470 + $0xa] sm:$0xff]
        %981 = vset.pattern.permute.xlu0 0
        %982 = vperm.xlu0 %981, %v978
        %v983 = vpop.permute.xlu0 %982
        %986 = vset.pattern.permute.xlu0 0
        %987 = vperm.xlu0 %986, %v979
        %v988 = vpop.permute.xlu0 %987
        %v990 = vlaneseq
        %v991 = vshrl.u32 %v990, 7
        %v992 = vsub.s32 2, %v991
        %v993 = vrot.slane %v925, %v992
        %v994 = vmul.f32 %v983, %v993
        %v995 = vmul.f32 %v988, %v993
        %v996 = vadd.f32 %v976, %v994
        %v997 = vadd.f32 %v977, %v995
        %v998 = vld [vmem:[%s470 + $0x3] sm:$0xff]
        %v999 = vld [vmem:[%s470 + $0xb] sm:$0xff]
        %1001 = vset.pattern.permute.xlu0 0
        %1002 = vperm.xlu0 %1001, %v998
        %v1003 = vpop.permute.xlu0 %1002
        %1006 = vset.pattern.permute.xlu0 0
        %1007 = vperm.xlu0 %1006, %v999
        %v1008 = vpop.permute.xlu0 %1007
        %v1010 = vlaneseq
        %v1011 = vshrl.u32 %v1010, 7
        %v1012 = vsub.s32 3, %v1011
        %v1013 = vrot.slane %v925, %v1012
        %v1014 = vmul.f32 %v1003, %v1013
        %v1015 = vmul.f32 %v1008, %v1013
        %v1016 = vadd.f32 %v996, %v1014
        %v1017 = vadd.f32 %v997, %v1015
        %v1018 = vld [vmem:[%s470 + $0x4] sm:$0xff]
        %v1019 = vld [vmem:[%s470 + $0xc] sm:$0xff]
        %1021 = vset.pattern.permute.xlu0 0
        %1022 = vperm.xlu0 %1021, %v1018
        %v1023 = vpop.permute.xlu0 %1022
        %1026 = vset.pattern.permute.xlu0 0
        %1027 = vperm.xlu0 %1026, %v1019
        %v1028 = vpop.permute.xlu0 %1027
        %v1030 = vlaneseq
        %v1031 = vshrl.u32 %v1030, 7
        %v1032 = vsub.s32 4, %v1031
        %v1033 = vrot.slane %v925, %v1032
        %v1034 = vmul.f32 %v1023, %v1033
        %v1035 = vmul.f32 %v1028, %v1033
        %v1036 = vadd.f32 %v1016, %v1034
        %v1037 = vadd.f32 %v1017, %v1035
        %v1038 = vld [vmem:[%s470 + $0x5] sm:$0xff]
        %v1039 = vld [vmem:[%s470 + $0xd] sm:$0xff]
        %1041 = vset.pattern.permute.xlu0 0
        %1042 = vperm.xlu0 %1041, %v1038
        %v1043 = vpop.permute.xlu0 %1042
        %1046 = vset.pattern.permute.xlu0 0
        %1047 = vperm.xlu0 %1046, %v1039
        %v1048 = vpop.permute.xlu0 %1047
        %v1050 = vlaneseq
        %v1051 = vshrl.u32 %v1050, 7
        %v1052 = vsub.s32 5, %v1051
        %v1053 = vrot.slane %v925, %v1052
        %v1054 = vmul.f32 %v1043, %v1053
        %v1055 = vmul.f32 %v1048, %v1053
        %v1056 = vadd.f32 %v1036, %v1054
        %v1057 = vadd.f32 %v1037, %v1055
        %v1058 = vld [vmem:[%s470 + $0x6] sm:$0xff]
        %v1059 = vld [vmem:[%s470 + $0xe] sm:$0xff]
        %1061 = vset.pattern.permute.xlu0 0
        %1062 = vperm.xlu0 %1061, %v1058
        %v1063 = vpop.permute.xlu0 %1062
        %1066 = vset.pattern.permute.xlu0 0
        %1067 = vperm.xlu0 %1066, %v1059
        %v1068 = vpop.permute.xlu0 %1067
        %v1070 = vlaneseq
        %v1071 = vshrl.u32 %v1070, 7
        %v1072 = vsub.s32 6, %v1071
        %v1073 = vrot.slane %v925, %v1072
        %v1074 = vmul.f32 %v1063, %v1073
        %v1075 = vmul.f32 %v1068, %v1073
        %v1076 = vadd.f32 %v1056, %v1074
        %v1077 = vadd.f32 %v1057, %v1075
        %v1078 = vld [vmem:[%s470 + $0x7] sm:$0xff]
        %v1079 = vld [vmem:[%s470 + $0xf] sm:$0xff]
        %1081 = vset.pattern.permute.xlu0 0
        %1082 = vperm.xlu0 %1081, %v1078
        %v1083 = vpop.permute.xlu0 %1082
        %1086 = vset.pattern.permute.xlu0 0
        %1087 = vperm.xlu0 %1086, %v1079
        %v1088 = vpop.permute.xlu0 %1087
        %v1090 = vlaneseq
        %v1091 = vshrl.u32 %v1090, 7
        %v1092 = vsub.s32 7, %v1091
        %v1093 = vrot.slane %v925, %v1092
        %v1094 = vmul.f32 %v1083, %v1093
        %v1095 = vmul.f32 %v1088, %v1093
        %v1096 = vadd.f32 %v1076, %v1094
        %v1097 = vadd.f32 %v1077, %v1095
        %v1098 = vld [vmem:[%s470 + $0x8] sm:$0xff]
        %v1099 = vld [vmem:[%s470 + $0x10] sm:$0xff]
        %1101 = vset.pattern.permute.xlu0 0
        %1102 = vperm.xlu0 %1101, %v1098
        %v1103 = vpop.permute.xlu0 %1102
        %1106 = vset.pattern.permute.xlu0 0
        %1107 = vperm.xlu0 %1106, %v1099
        %v1108 = vpop.permute.xlu0 %1107
        %v1110 = vlaneseq
        %v1111 = vshrl.u32 %v1110, 7
        %v1112 = vsub.s32 0, %v1111
        %v1113 = vrot.slane %v926, %v1112
        %v1114 = vmul.f32 %v1103, %v1113
        %v1115 = vmul.f32 %v1108, %v1113
        %v1116 = vadd.f32 %v1096, %v1114
        %v1117 = vadd.f32 %v1097, %v1115
        %v1118 = vld [vmem:[%s470 + $0x9] sm:$0xff]
        %v1119 = vld [vmem:[%s470 + $0x11] sm:$0xff]
        %1121 = vset.pattern.permute.xlu0 0
        %1122 = vperm.xlu0 %1121, %v1118
        %v1123 = vpop.permute.xlu0 %1122
        %1126 = vset.pattern.permute.xlu0 0
        %1127 = vperm.xlu0 %1126, %v1119
        %v1128 = vpop.permute.xlu0 %1127
        %v1130 = vlaneseq
        %v1131 = vshrl.u32 %v1130, 7
        %v1132 = vsub.s32 1, %v1131
        %v1133 = vrot.slane %v926, %v1132
        %v1134 = vmul.f32 %v1123, %v1133
        %v1135 = vmul.f32 %v1128, %v1133
        %v1136 = vadd.f32 %v1116, %v1134
        %v1137 = vadd.f32 %v1117, %v1135
        %v1138 = vld [vmem:[%s470 + $0xa] sm:$0xff]
        %v1139 = vld [vmem:[%s470 + $0x12] sm:$0xff]
        %1141 = vset.pattern.permute.xlu0 0
        %1142 = vperm.xlu0 %1141, %v1138
        %v1143 = vpop.permute.xlu0 %1142
        %1146 = vset.pattern.permute.xlu0 0
        %1147 = vperm.xlu0 %1146, %v1139
        %v1148 = vpop.permute.xlu0 %1147
        %v1150 = vlaneseq
        %v1151 = vshrl.u32 %v1150, 7
        %v1152 = vsub.s32 2, %v1151
        %v1153 = vrot.slane %v926, %v1152
        %v1154 = vmul.f32 %v1143, %v1153
        %v1155 = vmul.f32 %v1148, %v1153
        %v1156 = vadd.f32 %v1136, %v1154
        %v1157 = vadd.f32 %v1137, %v1155
        %v1158 = vld [vmem:[%s470 + $0xb] sm:$0xff]
        %v1159 = vld [vmem:[%s470 + $0x13] sm:$0xff]
        %1161 = vset.pattern.permute.xlu0 0
        %1162 = vperm.xlu0 %1161, %v1158
        %v1163 = vpop.permute.xlu0 %1162
        %1166 = vset.pattern.permute.xlu0 0
        %1167 = vperm.xlu0 %1166, %v1159
        %v1168 = vpop.permute.xlu0 %1167
        %v1170 = vlaneseq
        %v1171 = vshrl.u32 %v1170, 7
        %v1172 = vsub.s32 3, %v1171
        %v1173 = vrot.slane %v926, %v1172
        %v1174 = vmul.f32 %v1163, %v1173
        %v1175 = vmul.f32 %v1168, %v1173
        %v1176 = vadd.f32 %v1156, %v1174
        %v1177 = vadd.f32 %v1157, %v1175
        %v1178 = vld [vmem:[%s470 + $0xc] sm:$0xff]
        %v1179 = vld [vmem:[%s470 + $0x14] sm:$0xff]
        %1181 = vset.pattern.permute.xlu0 0
        %1182 = vperm.xlu0 %1181, %v1178
        %v1183 = vpop.permute.xlu0 %1182
        %1186 = vset.pattern.permute.xlu0 0
        %1187 = vperm.xlu0 %1186, %v1179
        %v1188 = vpop.permute.xlu0 %1187
        %v1190 = vlaneseq
        %v1191 = vshrl.u32 %v1190, 7
        %v1192 = vsub.s32 4, %v1191
        %v1193 = vrot.slane %v926, %v1192
        %v1194 = vmul.f32 %v1183, %v1193
        %v1195 = vmul.f32 %v1188, %v1193
        %v1196 = vadd.f32 %v1176, %v1194
        %v1197 = vadd.f32 %v1177, %v1195
        %v1198 = vld [vmem:[%s470 + $0xd] sm:$0xff]
        %v1199 = vld [vmem:[%s470 + $0x15] sm:$0xff]
        %1201 = vset.pattern.permute.xlu0 0
        %1202 = vperm.xlu0 %1201, %v1198
        %v1203 = vpop.permute.xlu0 %1202
        %1206 = vset.pattern.permute.xlu0 0
        %1207 = vperm.xlu0 %1206, %v1199
        %v1208 = vpop.permute.xlu0 %1207
        %v1210 = vlaneseq
        %v1211 = vshrl.u32 %v1210, 7
        %v1212 = vsub.s32 5, %v1211
        %v1213 = vrot.slane %v926, %v1212
        %v1214 = vmul.f32 %v1203, %v1213
        %v1215 = vmul.f32 %v1208, %v1213
        %v1216 = vadd.f32 %v1196, %v1214
        %v1217 = vadd.f32 %v1197, %v1215
        %v1218 = vld [vmem:[%s470 + $0xe] sm:$0xff]
        %v1219 = vld [vmem:[%s470 + $0x16] sm:$0xff]
        %1221 = vset.pattern.permute.xlu0 0
        %1222 = vperm.xlu0 %1221, %v1218
        %v1223 = vpop.permute.xlu0 %1222
        %1226 = vset.pattern.permute.xlu0 0
        %1227 = vperm.xlu0 %1226, %v1219
        %v1228 = vpop.permute.xlu0 %1227
        %v1230 = vlaneseq
        %v1231 = vshrl.u32 %v1230, 7
        %v1232 = vsub.s32 6, %v1231
        %v1233 = vrot.slane %v926, %v1232
        %v1234 = vmul.f32 %v1223, %v1233
        %v1235 = vmul.f32 %v1228, %v1233
        %v1236 = vadd.f32 %v1216, %v1234
        %v1237 = vadd.f32 %v1217, %v1235
        %v1238 = vld [vmem:[%s470 + $0xf] sm:$0xff]
        %v1239 = vld [vmem:[%s470 + $0x17] sm:$0xff]
        %1241 = vset.pattern.permute.xlu0 0
        %1242 = vperm.xlu0 %1241, %v1238
        %v1243 = vpop.permute.xlu0 %1242
        %1246 = vset.pattern.permute.xlu0 0
        %1247 = vperm.xlu0 %1246, %v1239
        %v1248 = vpop.permute.xlu0 %1247
        %v1250 = vlaneseq
        %v1251 = vshrl.u32 %v1250, 7
        %v1252 = vsub.s32 7, %v1251
        %v1253 = vrot.slane %v926, %v1252
        %v1254 = vmul.f32 %v1243, %v1253
        %v1255 = vmul.f32 %v1248, %v1253
        %v1256 = vadd.f32 %v1236, %v1254
        %v1257 = vadd.f32 %v1237, %v1255
        %v1258 = vld [vmem:[%s470 + $0x10] sm:$0xff]
        %v1259 = vld [vmem:[%s470 + $0x18] sm:$0xff]
        %1261 = vset.pattern.permute.xlu0 0
        %1262 = vperm.xlu0 %1261, %v1258
        %v1263 = vpop.permute.xlu0 %1262
        %1266 = vset.pattern.permute.xlu0 0
        %1267 = vperm.xlu0 %1266, %v1259
        %v1268 = vpop.permute.xlu0 %1267
        %v1270 = vlaneseq
        %v1271 = vshrl.u32 %v1270, 7
        %v1272 = vsub.s32 0, %v1271
        %v1273 = vrot.slane %v927, %v1272
        %v1274 = vmul.f32 %v1263, %v1273
        %v1275 = vmul.f32 %v1268, %v1273
        %v1276 = vadd.f32 %v1256, %v1274
        %v1277 = vadd.f32 %v1257, %v1275
        %v1278 = vld [vmem:[%s470 + $0x11] sm:$0xff]
        %v1279 = vld [vmem:[%s470 + $0x19] sm:$0xff]
        %1281 = vset.pattern.permute.xlu0 0
        %1282 = vperm.xlu0 %1281, %v1278
        %v1283 = vpop.permute.xlu0 %1282
        %1286 = vset.pattern.permute.xlu0 0
        %1287 = vperm.xlu0 %1286, %v1279
        %v1288 = vpop.permute.xlu0 %1287
        %v1290 = vlaneseq
        %v1291 = vshrl.u32 %v1290, 7
        %v1292 = vsub.s32 1, %v1291
        %v1293 = vrot.slane %v927, %v1292
        %v1294 = vmul.f32 %v1283, %v1293
        %v1295 = vmul.f32 %v1288, %v1293
        %v1296 = vadd.f32 %v1276, %v1294
        %v1297 = vadd.f32 %v1277, %v1295
        %v1298 = vld [vmem:[%s470 + $0x12] sm:$0xff]
        %v1299 = vld [vmem:[%s470 + $0x1a] sm:$0xff]
        %1301 = vset.pattern.permute.xlu0 0
        %1302 = vperm.xlu0 %1301, %v1298
        %v1303 = vpop.permute.xlu0 %1302
        %1306 = vset.pattern.permute.xlu0 0
        %1307 = vperm.xlu0 %1306, %v1299
        %v1308 = vpop.permute.xlu0 %1307
        %v1310 = vlaneseq
        %v1311 = vshrl.u32 %v1310, 7
        %v1312 = vsub.s32 2, %v1311
        %v1313 = vrot.slane %v927, %v1312
        %v1314 = vmul.f32 %v1303, %v1313
        %v1315 = vmul.f32 %v1308, %v1313
        %v1316 = vadd.f32 %v1296, %v1314
        %v1317 = vadd.f32 %v1297, %v1315
        %v1318 = vld [vmem:[%s470 + $0x13] sm:$0xff]
        %v1319 = vld [vmem:[%s470 + $0x1b] sm:$0xff]
        %1321 = vset.pattern.permute.xlu0 0
        %1322 = vperm.xlu0 %1321, %v1318
        %v1323 = vpop.permute.xlu0 %1322
        %1326 = vset.pattern.permute.xlu0 0
        %1327 = vperm.xlu0 %1326, %v1319
        %v1328 = vpop.permute.xlu0 %1327
        %v1330 = vlaneseq
        %v1331 = vshrl.u32 %v1330, 7
        %v1332 = vsub.s32 3, %v1331
        %v1333 = vrot.slane %v927, %v1332
        %v1334 = vmul.f32 %v1323, %v1333
        %v1335 = vmul.f32 %v1328, %v1333
        %v1336 = vadd.f32 %v1316, %v1334
        %v1337 = vadd.f32 %v1317, %v1335
        %v1338 = vld [vmem:[%s470 + $0x14] sm:$0xff]
        %v1339 = vld [vmem:[%s470 + $0x1c] sm:$0xff]
        %1341 = vset.pattern.permute.xlu0 0
        %1342 = vperm.xlu0 %1341, %v1338
        %v1343 = vpop.permute.xlu0 %1342
        %1346 = vset.pattern.permute.xlu0 0
        %1347 = vperm.xlu0 %1346, %v1339
        %v1348 = vpop.permute.xlu0 %1347
        %v1350 = vlaneseq
        %v1351 = vshrl.u32 %v1350, 7
        %v1352 = vsub.s32 4, %v1351
        %v1353 = vrot.slane %v927, %v1352
        %v1354 = vmul.f32 %v1343, %v1353
        %v1355 = vmul.f32 %v1348, %v1353
        %v1356 = vadd.f32 %v1336, %v1354
        %v1357 = vadd.f32 %v1337, %v1355
        %v1358 = vld [vmem:[%s470 + $0x15] sm:$0xff]
        %v1359 = vld [vmem:[%s470 + $0x1d] sm:$0xff]
        %1361 = vset.pattern.permute.xlu0 0
        %1362 = vperm.xlu0 %1361, %v1358
        %v1363 = vpop.permute.xlu0 %1362
        %1366 = vset.pattern.permute.xlu0 0
        %1367 = vperm.xlu0 %1366, %v1359
        %v1368 = vpop.permute.xlu0 %1367
        %v1370 = vlaneseq
        %v1371 = vshrl.u32 %v1370, 7
        %v1372 = vsub.s32 5, %v1371
        %v1373 = vrot.slane %v927, %v1372
        %v1374 = vmul.f32 %v1363, %v1373
        %v1375 = vmul.f32 %v1368, %v1373
        %v1376 = vadd.f32 %v1356, %v1374
        %v1377 = vadd.f32 %v1357, %v1375
        %v1378 = vld [vmem:[%s470 + $0x16] sm:$0xff]
        %v1379 = vld [vmem:[%s470 + $0x1e] sm:$0xff]
        %1381 = vset.pattern.permute.xlu0 0
        %1382 = vperm.xlu0 %1381, %v1378
        %v1383 = vpop.permute.xlu0 %1382
        %1386 = vset.pattern.permute.xlu0 0
        %1387 = vperm.xlu0 %1386, %v1379
        %v1388 = vpop.permute.xlu0 %1387
        %v1390 = vlaneseq
        %v1391 = vshrl.u32 %v1390, 7
        %v1392 = vsub.s32 6, %v1391
        %v1393 = vrot.slane %v927, %v1392
        %v1394 = vmul.f32 %v1383, %v1393
        %v1395 = vmul.f32 %v1388, %v1393
        %v1396 = vadd.f32 %v1376, %v1394
        %v1397 = vadd.f32 %v1377, %v1395
        %v1398 = vld [vmem:[%s470 + $0x17] sm:$0xff]
        %v1399 = vld [vmem:[%s470 + $0x1f] sm:$0xff]
        %1401 = vset.pattern.permute.xlu0 0
        %1402 = vperm.xlu0 %1401, %v1398
        %v1403 = vpop.permute.xlu0 %1402
        %1406 = vset.pattern.permute.xlu0 0
        %1407 = vperm.xlu0 %1406, %v1399
        %v1408 = vpop.permute.xlu0 %1407
        %v1410 = vlaneseq
        %v1411 = vshrl.u32 %v1410, 7
        %v1412 = vsub.s32 7, %v1411
        %v1413 = vrot.slane %v927, %v1412
        %v1414 = vmul.f32 %v1403, %v1413
        %v1415 = vmul.f32 %v1408, %v1413
        %v1416 = vadd.f32 %v1396, %v1414
        %v1417 = vadd.f32 %v1397, %v1415
        %v1418 = vld [vmem:[%s470 + $0x18] sm:$0xff]
        %v1419 = vld [vmem:[%s470 + $0x20] sm:$0xff]
        %1421 = vset.pattern.permute.xlu0 0
        %1422 = vperm.xlu0 %1421, %v1418
        %v1423 = vpop.permute.xlu0 %1422
        %1426 = vset.pattern.permute.xlu0 0
        %1427 = vperm.xlu0 %1426, %v1419
        %v1428 = vpop.permute.xlu0 %1427
        %v1430 = vlaneseq
        %v1431 = vshrl.u32 %v1430, 7
        %v1432 = vsub.s32 0, %v1431
        %v1433 = vrot.slane %v928, %v1432
        %v1434 = vmul.f32 %v1423, %v1433
        %v1435 = vmul.f32 %v1428, %v1433
        %v1436 = vadd.f32 %v1416, %v1434
        %v1437 = vadd.f32 %v1417, %v1435
        %v1438 = vld [vmem:[%s470 + $0x19] sm:$0xff]
        %v1439 = vld [vmem:[%s470 + $0x21] sm:$0xff]
        %1441 = vset.pattern.permute.xlu0 0
        %1442 = vperm.xlu0 %1441, %v1438
        %v1443 = vpop.permute.xlu0 %1442
        %1446 = vset.pattern.permute.xlu0 0
        %1447 = vperm.xlu0 %1446, %v1439
        %v1448 = vpop.permute.xlu0 %1447
        %v1450 = vlaneseq
        %v1451 = vshrl.u32 %v1450, 7
        %v1452 = vsub.s32 1, %v1451
        %v1453 = vrot.slane %v928, %v1452
        %v1454 = vmul.f32 %v1443, %v1453
        %v1455 = vmul.f32 %v1448, %v1453
        %v1456 = vadd.f32 %v1436, %v1454
        %v1457 = vadd.f32 %v1437, %v1455
        %v1458 = vld [vmem:[%s470 + $0x1a] sm:$0xff]
        %v1459 = vld [vmem:[%s470 + $0x22] sm:$0xff]
        %1461 = vset.pattern.permute.xlu0 0
        %1462 = vperm.xlu0 %1461, %v1458
        %v1463 = vpop.permute.xlu0 %1462
        %1466 = vset.pattern.permute.xlu0 0
        %1467 = vperm.xlu0 %1466, %v1459
        %v1468 = vpop.permute.xlu0 %1467
        %v1470 = vlaneseq
        %v1471 = vshrl.u32 %v1470, 7
        %v1472 = vsub.s32 2, %v1471
        %v1473 = vrot.slane %v928, %v1472
        %v1474 = vmul.f32 %v1463, %v1473
        %v1475 = vmul.f32 %v1468, %v1473
        %v1476 = vadd.f32 %v1456, %v1474
        %v1477 = vadd.f32 %v1457, %v1475
        %v1478 = vld [vmem:[%s470 + $0x1b] sm:$0xff]
        %v1479 = vld [vmem:[%s470 + $0x23] sm:$0xff]
        %1481 = vset.pattern.permute.xlu0 0
        %1482 = vperm.xlu0 %1481, %v1478
        %v1483 = vpop.permute.xlu0 %1482
        %1486 = vset.pattern.permute.xlu0 0
        %1487 = vperm.xlu0 %1486, %v1479
        %v1488 = vpop.permute.xlu0 %1487
        %v1490 = vlaneseq
        %v1491 = vshrl.u32 %v1490, 7
        %v1492 = vsub.s32 3, %v1491
        %v1493 = vrot.slane %v928, %v1492
        %v1494 = vmul.f32 %v1483, %v1493
        %v1495 = vmul.f32 %v1488, %v1493
        %v1496 = vadd.f32 %v1476, %v1494
        %v1497 = vadd.f32 %v1477, %v1495
        %v1498 = vld [vmem:[%s470 + $0x1c] sm:$0xff]
        %v1499 = vld [vmem:[%s470 + $0x24] sm:$0xff]
        %1501 = vset.pattern.permute.xlu0 0
        %1502 = vperm.xlu0 %1501, %v1498
        %v1503 = vpop.permute.xlu0 %1502
        %1506 = vset.pattern.permute.xlu0 0
        %1507 = vperm.xlu0 %1506, %v1499
        %v1508 = vpop.permute.xlu0 %1507
        %v1510 = vlaneseq
        %v1511 = vshrl.u32 %v1510, 7
        %v1512 = vsub.s32 4, %v1511
        %v1513 = vrot.slane %v928, %v1512
        %v1514 = vmul.f32 %v1503, %v1513
        %v1515 = vmul.f32 %v1508, %v1513
        %v1516 = vadd.f32 %v1496, %v1514
        %v1517 = vadd.f32 %v1497, %v1515
        %v1518 = vld [vmem:[%s470 + $0x1d] sm:$0xff]
        %v1519 = vld [vmem:[%s470 + $0x25] sm:$0xff]
        %1521 = vset.pattern.permute.xlu0 0
        %1522 = vperm.xlu0 %1521, %v1518
        %v1523 = vpop.permute.xlu0 %1522
        %1526 = vset.pattern.permute.xlu0 0
        %1527 = vperm.xlu0 %1526, %v1519
        %v1528 = vpop.permute.xlu0 %1527
        %v1530 = vlaneseq
        %v1531 = vshrl.u32 %v1530, 7
        %v1532 = vsub.s32 5, %v1531
        %v1533 = vrot.slane %v928, %v1532
        %v1534 = vmul.f32 %v1523, %v1533
        %v1535 = vmul.f32 %v1528, %v1533
        %v1536 = vadd.f32 %v1516, %v1534
        %v1537 = vadd.f32 %v1517, %v1535
        %v1538 = vld [vmem:[%s470 + $0x1e] sm:$0xff]
        %v1539 = vld [vmem:[%s470 + $0x26] sm:$0xff]
        %1541 = vset.pattern.permute.xlu0 0
        %1542 = vperm.xlu0 %1541, %v1538
        %v1543 = vpop.permute.xlu0 %1542
        %1546 = vset.pattern.permute.xlu0 0
        %1547 = vperm.xlu0 %1546, %v1539
        %v1548 = vpop.permute.xlu0 %1547
        %v1550 = vlaneseq
        %v1551 = vshrl.u32 %v1550, 7
        %v1552 = vsub.s32 6, %v1551
        %v1553 = vrot.slane %v928, %v1552
        %v1554 = vmul.f32 %v1543, %v1553
        %v1555 = vmul.f32 %v1548, %v1553
        %v1556 = vadd.f32 %v1536, %v1554
        %v1557 = vadd.f32 %v1537, %v1555
        %v1558 = vtanh.pop %v1556
        %v1559 = vtanh.pop %v1557
        %v1561 = vlaneseq
        %v1562 = vshrl.u32 %v1561, 7
        %v1563 = vsub.s32 0, %v1562
        %v1564 = vrot.slane %v929, %v1563
        %v1566 = vmul.f32 %v1558, %v1564
        %v1567 = vmul.f32 %v1559, %v1564
        %1568 = vadd.xlane.f32.xlu0 %v1566
        %v1569 = vpop.xlane.xlu0 %1568
        %1570 = vadd.xlane.f32.xlu0 %v1567
        %v1571 = vpop.xlane.xlu0 %1570
        %v1572 = vlaneseq
        %v1573 = vand.u32 %v1572, 127
        %v1574 = vld [vmem:[%s473] sm:$0x1]
        %1575 = vset.pattern.permute.xlu0 0
        %1576 = vperm.xlu0 %1575, %v1574
        %v1577 = vpop.permute.xlu0 %1576
        %v1578 = vlaneseq
        %v1579 = vshrl.u32 %v1578, 7
        %v1580 = vsub.s32 0, %v1579
        %v1581 = vrot.slane %v1577, %v1580
        %vm1582 = vcmp.lt.s32.totalorder %v1573, %v1581
        %v1585 = vlaneseq
        %v1586 = vshrl.u32 %v1585, 7
        %v1587 = vsub.s32 %v1573, %v1586
        %v1588 = vrot.slane %v1569, %v1587
        %v1589 = vadd.s32 %v1573, 4294967288
        %v1590 = vlaneseq
        %v1591 = vshrl.u32 %v1590, 7
        %v1592 = vsub.s32 %v1589, %v1591
        %v1593 = vrot.slane %v1571, %v1592
        %vm1594 = vcmask 130112
        %v1595 = vsel %vm1594, %v1593, %v1588
        %v1597 = vsel %vm1582, %v1595, -1e+30
        %vm1598 = vcmask 122880
        %v1599 = vsel %vm1598, %v1597, -inf
        %1600 = vmax.xlane.f32.xlu0 %v1599
        %v1601 = vpop.xlane.xlu0 %1600
        %v1602 = vsub.f32 %v1597, %v1601
        %v1603 = vmul.f32 %v1602, 1.442695
        %v1604 = vpow.pop %v1603
        %v1605 = vsel %vm1598, %v1604, 0.0
        %1606 = vadd.xlane.f32.xlu0 %v1605
        %v1607 = vpop.xlane.xlu0 %1606
        %v1608 = vrcp.pop %v1607
        %v1609 = vmul.f32 %v1604, %v1608
        %1610 = vst.msk [vmem:[%s455] sm:$0x1] %vm1598, %v1609
        %v1611 = vlaneseq
        %v1612 = vshrl.u32 %v1611, 7
        %v1613 = vsub.s32 0, %v1612
        %v1614 = vrot.slane %v1609, %v1613
        %1616 = vbcast.lane.b32.xlu0 %v1614, 256
        %v1617 = vpop.permute.xlu0 %1616
        %s1619 = sor.u32 256, 8
        %1620 = vbcast.lane.b32.xlu0 %v1614, %s1619
        %v1621 = vpop.permute.xlu0 %1620
        %v1622 = vld [vmem:[%s460] sm:$0xff]
        %v1623 = vld [vmem:[%s460 + $0x8] sm:$0xff]
        %v1624 = vmul.f32 %v1617, %v1622
        %v1625 = vmul.f32 %v1621, %v1623
        %vm1626 = vcmask 261120
        %v1627 = vsel %vm1626, %v1624, 0.0
        %v1628 = vsel %vm1626, %v1625, 0.0
        %v1629 = vadd.f32 %v1627, %v1628
        %v1630 = vrot.slane %v1629, 4
        %v1631 = vadd.f32 %v1629, %v1630
        %v1632 = vrot.slane %v1631, 2
        %v1633 = vadd.f32 %v1631, %v1632
        %v1634 = vrot.slane %v1633, 1
        %v1635 = vadd.f32 %v1633, %v1634
        %vm1636 = vcmask 253952
        %1637 = vst.msk [vmem:[%s449] sm:$0x1] %vm1636, %v1635
        %s1638 = sand.u32 %s254, 1
        %s1639 = scalar_lea.sflag [#allocation4], %s1638
        %s1640 = sand.u32 %s254, 1
        %s1641 = scalar_lea.vmem [#allocation7], %s1640
        %s1642 = sand.u32 %s280, 1
        %s1643 = scalar_lea.sflag [#allocation9], %s1642
        %s1644 = sand.u32 %s280, 1
        %s1645 = scalar_lea.vmem [#allocation8], %s1644
        // Predicated region
        $region65: #{tpu_custom_call.1} parent=55 // pred_check
          %p1646 = pneg %p264
        $region66: #{tpu_custom_call.1} parent=55 // pred_check_branch
          %1648 = sbr.rel (%p1646) target = $region68
        $region67: #{tpu_custom_call.1} parent=55 // pred_region
          %s1650 = ssub.s32 16, 16
          %1651 = vsyncadd %s1639, %s1650
          %s1652 = smul.addr %s32, 16
          %s1653 = scalar_lea.hbm %s9, %s1652
          %s1655 = sshll.u32 %s1641, 4
          %s1656 = int_to_ptr.vmem [resolvable:$true] %s1655
          %1658 = dma.vmem_to_hbm [thread:$0]  %s1656, 16, %s1653, %s1639
        $region68: #{tpu_custom_call.1} parent=55 // pred_fallthru
          _
        // Predicated region
        $region69: #{tpu_custom_call.1} parent=55 // pred_check
          %p1659 = pneg %p290
        $region70: #{tpu_custom_call.1} parent=55 // pred_check_branch
          %1661 = sbr.rel (%p1659) target = $region72
        $region71: #{tpu_custom_call.1} parent=55 // pred_region
          %s1663 = ssub.s32 16, 16
          %1664 = vsyncadd %s1643, %s1663
          %s1665 = smul.addr %s32, 16
          %s1666 = scalar_lea.hbm %s10, %s1665
          %s1668 = sshll.u32 %s1645, 4
          %s1669 = int_to_ptr.vmem [resolvable:$true] %s1668
          %1671 = dma.vmem_to_hbm [thread:$0]  %s1669, 16, %s1666, %s1643
        $region72: #{tpu_custom_call.1} parent=55 // pred_fallthru
          _
      $region56: #{tpu_custom_call.1} parent=5 // pred_fallthru
        _
      %p1672 = scmp.le.s32.totalorder 2, %s27
      // Predicated region
      $region73: #{tpu_custom_call.1} parent=5 // pred_check
        %p1673 = pneg %p1672
      $region74: #{tpu_custom_call.1} parent=5 // pred_check_branch
        %1675 = sbr.rel (%p1673) target = $region76
      $region75: #{tpu_custom_call.1} parent=5 // pred_region
        %s1676 = ssub.s32 %s27, 2
        // Predicated region
        $region77: #{tpu_custom_call.1} parent=75 // pred_check
          %p1677 = pneg %p270
        $region78: #{tpu_custom_call.1} parent=75 // pred_check_branch
          %1679 = sbr.rel (%p1677) target = $region80
        $region79: #{tpu_custom_call.1} parent=75 // pred_region
          %s1680 = sand.u32 %s255, 1
          %s1681 = scalar_lea.sflag [#allocation4], %s1680
          %s1682 = sand.u32 %s255, 1
          %s1683 = scalar_lea.vmem [#allocation7], %s1682
          %1684 = dma.done %s1681, 16
        $region80: #{tpu_custom_call.1} parent=75 // pred_fallthru
          _
        // Predicated region
        $region81: #{tpu_custom_call.1} parent=75 // pred_check
          %p1685 = pneg %p296
        $region82: #{tpu_custom_call.1} parent=75 // pred_check_branch
          %1687 = sbr.rel (%p1685) target = $region84
        $region83: #{tpu_custom_call.1} parent=75 // pred_region
          %s1688 = sand.u32 %s281, 1
          %s1689 = scalar_lea.sflag [#allocation9], %s1688
          %s1690 = sand.u32 %s281, 1
          %s1691 = scalar_lea.vmem [#allocation8], %s1690
          %1692 = dma.done %s1689, 16
        $region84: #{tpu_custom_call.1} parent=75 // pred_fallthru
          _
      $region76: #{tpu_custom_call.1} parent=5 // pred_fallthru
        _
    $region6: #{tpu_custom_call.1} parent=1 // loop_footer
      %s31 = sadd.s32 1, %s27
    $region7: #{tpu_custom_call.1} parent=1 // loop_footer_branch
      %26 = sbr.rel target = $region3
    $region8: #{tpu_custom_call.1} parent=1 // loop_exit
      _
    %1693 = vsyncpa [#allocation3], 1
    %s1694 = scalar_lea.sflag [#allocation3], 1
    %1695 = vsyncpa %s1694, 1
    %1696 = vsyncpa [#allocation6], 1
    %1697 = vsyncpa [#allocation4], 1
    %s1698 = scalar_lea.sflag [#allocation4], 1
    %1699 = vsyncpa %s1698, 1
    %1700 = vsyncpa [#allocation9], 1
    %s1701 = scalar_lea.sflag [#allocation9], 1
    %1702 = vsyncpa %s1701, 1

</llo_original>
